<compile_context>
chip_gen: v5e
topology: v5e:2x2
jax: 0.10.0
libtpu: 0.0.40
codegen_flags: <defaults>
</compile_context>

<pallas_src>
import functools

import numpy as np
import jax
import jax.numpy as jnp
from jax import lax
from jax.experimental import pallas as pl
from jax.experimental.pallas import tpu as pltpu


_EPS = 1e-3  # floor/ceil nudge; validity bounds asserted in make_cutouts_pallas


def _pool_matrix(offset, size, in_len, out_len):
    """Adaptive-avg-pool weight matrix (out_len, in_len), lane-dense.

    Output index o averages input pixels in
      [offset + floor(o*size/out_len), offset + ceil((o+1)*size/out_len)),
    matching F.adaptive_avg_pool2d on a crop of `size` starting at `offset`.
    """
    pix = lax.broadcasted_iota(jnp.int32, (out_len, in_len), 1).astype(jnp.float32)
    o = lax.broadcasted_iota(jnp.int32, (out_len, in_len), 0).astype(jnp.float32)
    sz = size.astype(jnp.float32)
    start = jnp.floor(o * sz / out_len + _EPS)
    end = jnp.ceil((o + 1.0) * sz / out_len - _EPS)
    rel = pix - offset.astype(jnp.float32)
    mask = (rel >= start) & (rel < end)
    win = jnp.maximum(end - start, 1.0)
    return jnp.where(mask, 1.0 / win, 0.0)


def _make_cutouts_kernel(params_ref, img_ref, out_ref, *, cut_size, group_size):
    # params_ref: SMEM (n_padded*4,) int32, [off_y, off_x, size_y, size_x] per cutout
    # img_ref:    VMEM (N, C, Hp, Wp)  whole padded image (constant block)
    # out_ref:    VMEM (1, N*C*cut, group_size*cut)  lane-dense output slab
    g = pl.program_id(0)
    n, c, hp, wp = img_ref.shape
    nc = n * c

    # All (n, c) planes viewed as one (N*C*Hp, Wp) matrix; hoisted out of the loop.
    # TODO(synk): cast the image (and Px/Py) to bf16 for faster MXU matmuls once
    # the accuracy budget allows; kept f32 to hold the 1e-4 reference tolerance.
    img2d = img_ref[...].reshape(nc * hp, wp).astype(jnp.float32)

    cols = []
    # Static unroll over this group's cutouts so output lane offsets stay static.
    for j in range(group_size):
        idx = g * group_size + j
        off_y = params_ref[idx * 4 + 0]
        off_x = params_ref[idx * 4 + 1]
        size_y = params_ref[idx * 4 + 2]
        size_x = params_ref[idx * 4 + 3]

        px = _pool_matrix(off_x, size_x, wp, cut_size)   # (cut, Wp)
        py = _pool_matrix(off_y, size_y, hp, cut_size)   # (cut, Hp)

        # W-axis pooling, all planes fused into one big matmul:
        #   (N*C*Hp, Wp) x (Wp, cut) -> (N*C*Hp, cut)
        t = lax.dot_general(img2d, px,
                            dimension_numbers=(((1,), (1,)), ((), ())),
                            preferred_element_type=jnp.float32)
        # H-axis pooling, batched over the N*C planes:
        #   (N*C, cut, Hp) x (N*C, Hp, cut) -> (N*C, cut, cut)
        t3 = t.reshape(nc, hp, cut_size)
        py_b = jnp.broadcast_to(py, (nc, cut_size, hp))
        r = lax.dot_general(py_b, t3,
                            dimension_numbers=(((2,), (1,)), ((0,), (0,))),
                            preferred_element_type=jnp.float32)
        cols.append(r.reshape(nc * cut_size, cut_size))

    # Single dense store of the whole (N*C*cut, group*cut) slab for this step.
    out_ref[0, :, :] = jnp.concatenate(cols, axis=-1).astype(out_ref.dtype)


def make_cutouts_pallas(x_padded, params, cut_size):
    """x_padded: (N, C, Hp, Wp) float image; params: (n_cut, 4) int32 rows of
    [off_y, off_x, size_y, size_x].  Returns (n_cut, N, C, cut, cut)."""
    n_cut = params.shape[0]
    n, c, hp, wp = x_padded.shape
    nc = n * c

    # eps floor/ceil validity: window boundaries o*size/cut are multiples of
    # 1/cut (spacing > eps) and carry <= max_size * 2^-24 float error (< eps).
    assert cut_size < 1.0 / _EPS, "cut_size too large for eps floor/ceil trick"
    assert max(hp, wp) < _EPS * (1 << 24), "image too large for eps floor/ceil trick"

    n_groups = 2 if n_cut >= 2 else 1       # 2 steps -> v7x megacore via "parallel"
    group_size = -(-n_cut // n_groups)
    n_padded = n_groups * group_size
    if n_padded > n_cut:                    # pad with copies of last row; sliced off
        params = jnp.concatenate(
            [params, jnp.tile(params[-1:], (n_padded - n_cut, 1))], axis=0)
    params_flat = params.reshape(-1).astype(jnp.int32)   # 1-D SMEM, no 2-D padding

    kernel = functools.partial(_make_cutouts_kernel,
                               cut_size=cut_size, group_size=group_size)
    out = pl.pallas_call(
        kernel,
        out_shape=jax.ShapeDtypeStruct(
            (n_groups, nc * cut_size, group_size * cut_size), x_padded.dtype),
        grid_spec=pltpu.PrefetchScalarGridSpec(
            num_scalar_prefetch=1,
            grid=(n_groups,),
            # Whole image resident; constant index_map -> fetched once per core.
            # TODO(synk): pipeline_mode=pl.Buffered(1) would drop the redundant
            # second input buffer if VMEM headroom gets tight on v7x.
            in_specs=[pl.BlockSpec((n, c, hp, wp), lambda i, prm: (0, 0, 0, 0))],
            out_specs=pl.BlockSpec((1, nc * cut_size, group_size * cut_size),
                                   lambda i, prm: (i, 0, 0)),
        ),
        compiler_params=pltpu.CompilerParams(
            dimension_semantics=("parallel",),
            vmem_limit_bytes=64 * 1024 * 1024),
    )(params_flat, x_padded)

    # slab (groups, N*C*cut, group*cut) -> (cutout, N, C, cut, cut)
    out = out.reshape(n_groups, n, c, cut_size, group_size, cut_size)
    out = out.transpose(0, 4, 1, 2, 3, 5).reshape(n_padded, n, c, cut_size, cut_size)
    return out[:n_cut]


class MakeCutouts:
    """JAX/Pallas port of the PyTorch MakeCutouts module (skip_augs semantics)."""

    def __init__(self, cut_size, cutn, skip_augs=True):
        self.cut_size = cut_size
        self.cutn = cutn
        self.skip_augs = skip_augs
        # TODO(synk): torchvision random augs (RandomHorizontalFlip/RandomAffine/
        # RandomPerspective/RandomGrayscale) have no clean Pallas equivalent;
        # augmentations are skipped (skip_augs behavior).

    def __call__(self, x, key):
        n, c, h, w = x.shape
        pad = h // 4
        xp = jnp.pad(x, ((0, 0), (0, 0), (pad, pad), (pad, pad)))
        side_y, side_x = xp.shape[2], xp.shape[3]
        max_size = min(side_x, side_y)

        cutn = self.cutn
        # Clone cutouts are ch > cutn - cutn//4 (all identical full-image pools).
        n_clones = max(cutn // 4 - 1, 0)
        n_rand = cutn - n_clones

        # Vectorized param generation: no per-cutout host syncs, jit-friendly.
        k1, k2, k3 = jax.random.split(key, 3)
        r = jnp.clip(0.8 + 0.3 * jax.random.normal(k1, (n_rand,)),
                     self.cut_size / max_size, 1.0)
        size = jnp.floor(max_size * r).astype(jnp.int32)
        off_y = jax.random.randint(k2, (n_rand,), 0, jnp.abs(side_y - size + 1))
        off_x = jax.random.randint(k3, (n_rand,), 0, jnp.abs(side_x - size + 1))
        rand_params = jnp.stack([off_y, off_x, size, size], axis=1).astype(jnp.int32)
        clone_param = jnp.array([[0, 0, side_y, side_x]], dtype=jnp.int32)

        # Compute each distinct cutout once (clones share identical params).
        if n_clones >= 1:
            unique_params = jnp.concatenate([rand_params, clone_param], axis=0)
        else:
            unique_params = rand_params

        out_u = make_cutouts_pallas(xp, unique_params, self.cut_size)
        if n_clones >= 2:   # tile the single computed clone for its duplicates
            out_full = jnp.concatenate(
                [out_u, jnp.tile(out_u[-1:], (n_clones - 1, 1, 1, 1, 1))], axis=0)
            full_params = jnp.concatenate(
                [unique_params, jnp.tile(clone_param, (n_clones - 1, 1))], axis=0)
        else:
            out_full, full_params = out_u, unique_params

        # torch.cat(cutouts, 0) ordering: cutout-major.
        out = out_full.reshape(cutn * n, c, self.cut_size, self.cut_size)
        return out, full_params, xp


def _reference(xp_np, params_np, cut_size):
    """Pure-numpy reference: crop + adaptive_avg_pool2d, concat on dim 0."""
    outs = []
    for off_y, off_x, sy, sx in params_np:
        crop = xp_np[:, :, off_y:off_y + sy, off_x:off_x + sx]
        n, c, h, w = crop.shape
        out = np.zeros((n, c, cut_size, cut_size), dtype=np.float32)
        for p in range(cut_size):
            hs = (p * h) // cut_size
            he = -(-((p + 1) * h) // cut_size)
            for o in range(cut_size):
                ws = (o * w) // cut_size
                we = -(-((o + 1) * w) // cut_size)
                out[:, :, p, o] = crop[:, :, hs:he, ws:we].mean(axis=(2, 3))
        outs.append(out)
    return np.concatenate(outs, axis=0)


if __name__ == "__main__":
    key = jax.random.PRNGKey(0)
    k_x, k_cut = jax.random.split(key)

    # small deterministic example: N=2, C=3, 16x16 image, cut_size=8, cutn=8
    x = jax.random.normal(k_x, (2, 3, 16, 16), dtype=jnp.float32)
    module = MakeCutouts(cut_size=8, cutn=8)

    fwd = jax.jit(lambda xx, kk: module(xx, kk))   # __call__ is now jittable
    out, params, xp = fwd(x, k_cut)
    out = jax.block_until_ready(out)

    ref = _reference(np.asarray(xp), np.asarray(params), 8)
    np.testing.assert_allclose(np.asarray(out), ref, rtol=1e-4, atol=1e-4)
    assert out.shape == (8 * 2, 3, 8, 8)
    print("KERNEL_OK")
</pallas_src>

<mosaic_0001>
module attributes {stable_mosaic.version = 11 : i64} {
  func.func @_make_cutouts_kernel(%arg0: i32, %arg1: memref<32xi32, #tpu.memory_space<smem>>, %arg2: memref<2x3x24x24xf32, #tpu.memory_space<vmem>>, %arg3: memref<1x48x32xf32, #tpu.memory_space<vmem>>) attributes {dimension_semantics = [#tpu.dimension_semantics<parallel>], iteration_bounds = array<i64: 2>, scalar_prefetch = 1 : i64, scratch_operands = 0 : i64, tpu.core_type = #tpu.core_type<tc>, window_params = [{pipeline_mode = #tpu.pipeline_mode<synchronous>, transform_indices = @transform_0, window_bounds = array<i64: 2, 3, 24, 24>}, {transform_indices = @transform_1, window_bounds = array<i64: 1, 48, 32>}]} {
    %c0 = arith.constant 0 : index
    %c0_0 = arith.constant 0 : index
    %c0_1 = arith.constant 0 : index
    %c0_2 = arith.constant 0 : index
    %0 = vector.load %arg2[%c0, %c0_0, %c0_1, %c0_2] : memref<2x3x24x24xf32, #tpu.memory_space<vmem>>, vector<2x3x24x24xf32>
    %1 = vector.shape_cast %0 : vector<2x3x24x24xf32> to vector<144x24xf32>
    %c4_i32 = arith.constant 4 : i32
    %2 = arith.muli %arg0, %c4_i32 : i32
    %c0_i32 = arith.constant 0 : i32
    %3 = arith.addi %2, %c0_i32 : i32
    %c4_i32_3 = arith.constant 4 : i32
    %4 = arith.muli %3, %c4_i32_3 : i32
    %c0_i32_4 = arith.constant 0 : i32
    %5 = arith.addi %4, %c0_i32_4 : i32
    %6 = arith.index_cast %5 : i32 to index
    %7 = memref.load %arg1[%6] : memref<32xi32, #tpu.memory_space<smem>>
    %c4_i32_5 = arith.constant 4 : i32
    %8 = arith.muli %3, %c4_i32_5 : i32
    %c1_i32 = arith.constant 1 : i32
    %9 = arith.addi %8, %c1_i32 : i32
    %10 = arith.index_cast %9 : i32 to index
    %11 = memref.load %arg1[%10] : memref<32xi32, #tpu.memory_space<smem>>
    %c4_i32_6 = arith.constant 4 : i32
    %12 = arith.muli %3, %c4_i32_6 : i32
    %c2_i32 = arith.constant 2 : i32
    %13 = arith.addi %12, %c2_i32 : i32
    %14 = arith.index_cast %13 : i32 to index
    %15 = memref.load %arg1[%14] : memref<32xi32, #tpu.memory_space<smem>>
    %c4_i32_7 = arith.constant 4 : i32
    %16 = arith.muli %3, %c4_i32_7 : i32
    %c3_i32 = arith.constant 3 : i32
    %17 = arith.addi %16, %c3_i32 : i32
    %18 = arith.index_cast %17 : i32 to index
    %19 = memref.load %arg1[%18] : memref<32xi32, #tpu.memory_space<smem>>
    %20 = tpu.iota {dimensions = array<i32: 1>} : vector<8x24xi32>
    %21 = arith.sitofp %20 : vector<8x24xi32> to vector<8x24xf32>
    %22 = tpu.iota {dimensions = array<i32: 0>} : vector<8x24xi32>
    %23 = arith.sitofp %22 : vector<8x24xi32> to vector<8x24xf32>
    %24 = arith.sitofp %19 : i32 to f32
    %25 = vector.broadcast %24 : f32 to vector<8x24xf32>
    %26 = arith.mulf %23, %25 : vector<8x24xf32>
    %cst = arith.constant 8.000000e+00 : f32
    %27 = vector.broadcast %cst : f32 to vector<8x24xf32>
    %28 = arith.divf %26, %27 : vector<8x24xf32>
    %cst_8 = arith.constant 1.000000e-03 : f32
    %29 = vector.broadcast %cst_8 : f32 to vector<8x24xf32>
    %30 = arith.addf %28, %29 : vector<8x24xf32>
    %31 = math.floor %30 : vector<8x24xf32>
    %cst_9 = arith.constant 1.000000e+00 : f32
    %32 = vector.broadcast %cst_9 : f32 to vector<8x24xf32>
    %33 = arith.addf %23, %32 : vector<8x24xf32>
    %34 = vector.broadcast %24 : f32 to vector<8x24xf32>
    %35 = arith.mulf %33, %34 : vector<8x24xf32>
    %cst_10 = arith.constant 8.000000e+00 : f32
    %36 = vector.broadcast %cst_10 : f32 to vector<8x24xf32>
    %37 = arith.divf %35, %36 : vector<8x24xf32>
    %cst_11 = arith.constant 1.000000e-03 : f32
    %38 = vector.broadcast %cst_11 : f32 to vector<8x24xf32>
    %39 = arith.subf %37, %38 : vector<8x24xf32>
    %40 = math.ceil %39 : vector<8x24xf32>
    %41 = arith.sitofp %11 : i32 to f32
    %42 = vector.broadcast %41 : f32 to vector<8x24xf32>
    %43 = arith.subf %21, %42 : vector<8x24xf32>
    %44 = arith.cmpf oge, %43, %31 : vector<8x24xf32>
    %45 = arith.cmpf olt, %43, %40 : vector<8x24xf32>
    %46 = arith.andi %44, %45 : vector<8x24xi1>
    %47 = arith.subf %40, %31 : vector<8x24xf32>
    %cst_12 = arith.constant 1.000000e+00 : f32
    %48 = vector.broadcast %cst_12 : f32 to vector<8x24xf32>
    %49 = arith.maximumf %47, %48 : vector<8x24xf32>
    %cst_13 = arith.constant 1.000000e+00 : f32
    %50 = vector.broadcast %cst_13 : f32 to vector<8x24xf32>
    %51 = arith.divf %50, %49 : vector<8x24xf32>
    %cst_14 = arith.constant 0.000000e+00 : f32
    %52 = vector.broadcast %cst_14 : f32 to vector<8x24xf32>
    %53 = arith.select %46, %51, %52 : vector<8x24xi1>, vector<8x24xf32>
    %54 = tpu.iota {dimensions = array<i32: 1>} : vector<8x24xi32>
    %55 = arith.sitofp %54 : vector<8x24xi32> to vector<8x24xf32>
    %56 = tpu.iota {dimensions = array<i32: 0>} : vector<8x24xi32>
    %57 = arith.sitofp %56 : vector<8x24xi32> to vector<8x24xf32>
    %58 = arith.sitofp %15 : i32 to f32
    %59 = vector.broadcast %58 : f32 to vector<8x24xf32>
    %60 = arith.mulf %57, %59 : vector<8x24xf32>
    %cst_15 = arith.constant 8.000000e+00 : f32
    %61 = vector.broadcast %cst_15 : f32 to vector<8x24xf32>
    %62 = arith.divf %60, %61 : vector<8x24xf32>
    %cst_16 = arith.constant 1.000000e-03 : f32
    %63 = vector.broadcast %cst_16 : f32 to vector<8x24xf32>
    %64 = arith.addf %62, %63 : vector<8x24xf32>
    %65 = math.floor %64 : vector<8x24xf32>
    %cst_17 = arith.constant 1.000000e+00 : f32
    %66 = vector.broadcast %cst_17 : f32 to vector<8x24xf32>
    %67 = arith.addf %57, %66 : vector<8x24xf32>
    %68 = vector.broadcast %58 : f32 to vector<8x24xf32>
    %69 = arith.mulf %67, %68 : vector<8x24xf32>
    %cst_18 = arith.constant 8.000000e+00 : f32
    %70 = vector.broadcast %cst_18 : f32 to vector<8x24xf32>
    %71 = arith.divf %69, %70 : vector<8x24xf32>
    %cst_19 = arith.constant 1.000000e-03 : f32
    %72 = vector.broadcast %cst_19 : f32 to vector<8x24xf32>
    %73 = arith.subf %71, %72 : vector<8x24xf32>
    %74 = math.ceil %73 : vector<8x24xf32>
    %75 = arith.sitofp %7 : i32 to f32
    %76 = vector.broadcast %75 : f32 to vector<8x24xf32>
    %77 = arith.subf %55, %76 : vector<8x24xf32>
    %78 = arith.cmpf oge, %77, %65 : vector<8x24xf32>
    %79 = arith.cmpf olt, %77, %74 : vector<8x24xf32>
    %80 = arith.andi %78, %79 : vector<8x24xi1>
    %81 = arith.subf %74, %65 : vector<8x24xf32>
    %cst_20 = arith.constant 1.000000e+00 : f32
    %82 = vector.broadcast %cst_20 : f32 to vector<8x24xf32>
    %83 = arith.maximumf %81, %82 : vector<8x24xf32>
    %cst_21 = arith.constant 1.000000e+00 : f32
    %84 = vector.broadcast %cst_21 : f32 to vector<8x24xf32>
    %85 = arith.divf %84, %83 : vector<8x24xf32>
    %cst_22 = arith.constant 0.000000e+00 : f32
    %86 = vector.broadcast %cst_22 : f32 to vector<8x24xf32>
    %87 = arith.select %80, %85, %86 : vector<8x24xi1>, vector<8x24xf32>
    %cst_23 = arith.constant dense<0.000000e+00> : vector<144x8xf32>
    %88 = tpu.matmul %1, %53, %cst_23 {dimension_numbers = #tpu.dot_dimension_numbers<[1], [1], [0], [0], [0, 0, 1, 0], [], []>} : vector<144x24xf32>, vector<8x24xf32>, vector<144x8xf32> -> vector<144x8xf32>
    %89 = vector.shape_cast %88 : vector<144x8xf32> to vector<6x24x8xf32>
    %90 = vector.shape_cast %87 : vector<8x24xf32> to vector<1x8x24xf32>
    %91 = vector.broadcast %90 : vector<1x8x24xf32> to vector<6x8x24xf32>
    %cst_24 = arith.constant dense<0.000000e+00> : vector<6x8x8xf32>
    %92 = tpu.matmul %91, %89, %cst_24 {dimension_numbers = #tpu.dot_dimension_numbers<[2], [1], [1], [2], [0, 0, 0, 1, 1, 2], [0], [0]>} : vector<6x8x24xf32>, vector<6x24x8xf32>, vector<6x8x8xf32> -> vector<6x8x8xf32>
    %93 = vector.shape_cast %92 : vector<6x8x8xf32> to vector<48x8xf32>
    %c4_i32_25 = arith.constant 4 : i32
    %94 = arith.muli %arg0, %c4_i32_25 : i32
    %c1_i32_26 = arith.constant 1 : i32
    %95 = arith.addi %94, %c1_i32_26 : i32
    %c4_i32_27 = arith.constant 4 : i32
    %96 = arith.muli %95, %c4_i32_27 : i32
    %c0_i32_28 = arith.constant 0 : i32
    %97 = arith.addi %96, %c0_i32_28 : i32
    %98 = arith.index_cast %97 : i32 to index
    %99 = memref.load %arg1[%98] : memref<32xi32, #tpu.memory_space<smem>>
    %c4_i32_29 = arith.constant 4 : i32
    %100 = arith.muli %95, %c4_i32_29 : i32
    %c1_i32_30 = arith.constant 1 : i32
    %101 = arith.addi %100, %c1_i32_30 : i32
    %102 = arith.index_cast %101 : i32 to index
    %103 = memref.load %arg1[%102] : memref<32xi32, #tpu.memory_space<smem>>
    %c4_i32_31 = arith.constant 4 : i32
    %104 = arith.muli %95, %c4_i32_31 : i32
    %c2_i32_32 = arith.constant 2 : i32
    %105 = arith.addi %104, %c2_i32_32 : i32
    %106 = arith.index_cast %105 : i32 to index
    %107 = memref.load %arg1[%106] : memref<32xi32, #tpu.memory_space<smem>>
    %c4_i32_33 = arith.constant 4 : i32
    %108 = arith.muli %95, %c4_i32_33 : i32
    %c3_i32_34 = arith.constant 3 : i32
    %109 = arith.addi %108, %c3_i32_34 : i32
    %110 = arith.index_cast %109 : i32 to index
    %111 = memref.load %arg1[%110] : memref<32xi32, #tpu.memory_space<smem>>
    %112 = tpu.iota {dimensions = array<i32: 1>} : vector<8x24xi32>
    %113 = arith.sitofp %112 : vector<8x24xi32> to vector<8x24xf32>
    %114 = tpu.iota {dimensions = array<i32: 0>} : vector<8x24xi32>
    %115 = arith.sitofp %114 : vector<8x24xi32> to vector<8x24xf32>
    %116 = arith.sitofp %111 : i32 to f32
    %117 = vector.broadcast %116 : f32 to vector<8x24xf32>
    %118 = arith.mulf %115, %117 : vector<8x24xf32>
    %cst_35 = arith.constant 8.000000e+00 : f32
    %119 = vector.broadcast %cst_35 : f32 to vector<8x24xf32>
    %120 = arith.divf %118, %119 : vector<8x24xf32>
    %cst_36 = arith.constant 1.000000e-03 : f32
    %121 = vector.broadcast %cst_36 : f32 to vector<8x24xf32>
    %122 = arith.addf %120, %121 : vector<8x24xf32>
    %123 = math.floor %122 : vector<8x24xf32>
    %cst_37 = arith.constant 1.000000e+00 : f32
    %124 = vector.broadcast %cst_37 : f32 to vector<8x24xf32>
    %125 = arith.addf %115, %124 : vector<8x24xf32>
    %126 = vector.broadcast %116 : f32 to vector<8x24xf32>
    %127 = arith.mulf %125, %126 : vector<8x24xf32>
    %cst_38 = arith.constant 8.000000e+00 : f32
    %128 = vector.broadcast %cst_38 : f32 to vector<8x24xf32>
    %129 = arith.divf %127, %128 : vector<8x24xf32>
    %cst_39 = arith.constant 1.000000e-03 : f32
    %130 = vector.broadcast %cst_39 : f32 to vector<8x24xf32>
    %131 = arith.subf %129, %130 : vector<8x24xf32>
    %132 = math.ceil %131 : vector<8x24xf32>
    %133 = arith.sitofp %103 : i32 to f32
    %134 = vector.broadcast %133 : f32 to vector<8x24xf32>
    %135 = arith.subf %113, %134 : vector<8x24xf32>
    %136 = arith.cmpf oge, %135, %123 : vector<8x24xf32>
    %137 = arith.cmpf olt, %135, %132 : vector<8x24xf32>
    %138 = arith.andi %136, %137 : vector<8x24xi1>
    %139 = arith.subf %132, %123 : vector<8x24xf32>
    %cst_40 = arith.constant 1.000000e+00 : f32
    %140 = vector.broadcast %cst_40 : f32 to vector<8x24xf32>
    %141 = arith.maximumf %139, %140 : vector<8x24xf32>
    %cst_41 = arith.constant 1.000000e+00 : f32
    %142 = vector.broadcast %cst_41 : f32 to vector<8x24xf32>
    %143 = arith.divf %142, %141 : vector<8x24xf32>
    %cst_42 = arith.constant 0.000000e+00 : f32
    %144 = vector.broadcast %cst_42 : f32 to vector<8x24xf32>
    %145 = arith.select %138, %143, %144 : vector<8x24xi1>, vector<8x24xf32>
    %146 = tpu.iota {dimensions = array<i32: 1>} : vector<8x24xi32>
    %147 = arith.sitofp %146 : vector<8x24xi32> to vector<8x24xf32>
    %148 = tpu.iota {dimensions = array<i32: 0>} : vector<8x24xi32>
    %149 = arith.sitofp %148 : vector<8x24xi32> to vector<8x24xf32>
    %150 = arith.sitofp %107 : i32 to f32
    %151 = vector.broadcast %150 : f32 to vector<8x24xf32>
    %152 = arith.mulf %149, %151 : vector<8x24xf32>
    %cst_43 = arith.constant 8.000000e+00 : f32
    %153 = vector.broadcast %cst_43 : f32 to vector<8x24xf32>
    %154 = arith.divf %152, %153 : vector<8x24xf32>
    %cst_44 = arith.constant 1.000000e-03 : f32
    %155 = vector.broadcast %cst_44 : f32 to vector<8x24xf32>
    %156 = arith.addf %154, %155 : vector<8x24xf32>
    %157 = math.floor %156 : vector<8x24xf32>
    %cst_45 = arith.constant 1.000000e+00 : f32
    %158 = vector.broadcast %cst_45 : f32 to vector<8x24xf32>
    %159 = arith.addf %149, %158 : vector<8x24xf32>
    %160 = vector.broadcast %150 : f32 to vector<8x24xf32>
    %161 = arith.mulf %159, %160 : vector<8x24xf32>
    %cst_46 = arith.constant 8.000000e+00 : f32
    %162 = vector.broadcast %cst_46 : f32 to vector<8x24xf32>
    %163 = arith.divf %161, %162 : vector<8x24xf32>
    %cst_47 = arith.constant 1.000000e-03 : f32
    %164 = vector.broadcast %cst_47 : f32 to vector<8x24xf32>
    %165 = arith.subf %163, %164 : vector<8x24xf32>
    %166 = math.ceil %165 : vector<8x24xf32>
    %167 = arith.sitofp %99 : i32 to f32
    %168 = vector.broadcast %167 : f32 to vector<8x24xf32>
    %169 = arith.subf %147, %168 : vector<8x24xf32>
    %170 = arith.cmpf oge, %169, %157 : vector<8x24xf32>
    %171 = arith.cmpf olt, %169, %166 : vector<8x24xf32>
    %172 = arith.andi %170, %171 : vector<8x24xi1>
    %173 = arith.subf %166, %157 : vector<8x24xf32>
    %cst_48 = arith.constant 1.000000e+00 : f32
    %174 = vector.broadcast %cst_48 : f32 to vector<8x24xf32>
    %175 = arith.maximumf %173, %174 : vector<8x24xf32>
    %cst_49 = arith.constant 1.000000e+00 : f32
    %176 = vector.broadcast %cst_49 : f32 to vector<8x24xf32>
    %177 = arith.divf %176, %175 : vector<8x24xf32>
    %cst_50 = arith.constant 0.000000e+00 : f32
    %178 = vector.broadcast %cst_50 : f32 to vector<8x24xf32>
    %179 = arith.select %172, %177, %178 : vector<8x24xi1>, vector<8x24xf32>
    %cst_51 = arith.constant dense<0.000000e+00> : vector<144x8xf32>
    %180 = tpu.matmul %1, %145, %cst_51 {dimension_numbers = #tpu.dot_dimension_numbers<[1], [1], [0], [0], [0, 0, 1, 0], [], []>} : vector<144x24xf32>, vector<8x24xf32>, vector<144x8xf32> -> vector<144x8xf32>
    %181 = vector.shape_cast %180 : vector<144x8xf32> to vector<6x24x8xf32>
    %182 = vector.shape_cast %179 : vector<8x24xf32> to vector<1x8x24xf32>
    %183 = vector.broadcast %182 : vector<1x8x24xf32> to vector<6x8x24xf32>
    %cst_52 = arith.constant dense<0.000000e+00> : vector<6x8x8xf32>
    %184 = tpu.matmul %183, %181, %cst_52 {dimension_numbers = #tpu.dot_dimension_numbers<[2], [1], [1], [2], [0, 0, 0, 1, 1, 2], [0], [0]>} : vector<6x8x24xf32>, vector<6x24x8xf32>, vector<6x8x8xf32> -> vector<6x8x8xf32>
    %185 = vector.shape_cast %184 : vector<6x8x8xf32> to vector<48x8xf32>
    %c4_i32_53 = arith.constant 4 : i32
    %186 = arith.muli %arg0, %c4_i32_53 : i32
    %c2_i32_54 = arith.constant 2 : i32
    %187 = arith.addi %186, %c2_i32_54 : i32
    %c4_i32_55 = arith.constant 4 : i32
    %188 = arith.muli %187, %c4_i32_55 : i32
    %c0_i32_56 = arith.constant 0 : i32
    %189 = arith.addi %188, %c0_i32_56 : i32
    %190 = arith.index_cast %189 : i32 to index
    %191 = memref.load %arg1[%190] : memref<32xi32, #tpu.memory_space<smem>>
    %c4_i32_57 = arith.constant 4 : i32
    %192 = arith.muli %187, %c4_i32_57 : i32
    %c1_i32_58 = arith.constant 1 : i32
    %193 = arith.addi %192, %c1_i32_58 : i32
    %194 = arith.index_cast %193 : i32 to index
    %195 = memref.load %arg1[%194] : memref<32xi32, #tpu.memory_space<smem>>
    %c4_i32_59 = arith.constant 4 : i32
    %196 = arith.muli %187, %c4_i32_59 : i32
    %c2_i32_60 = arith.constant 2 : i32
    %197 = arith.addi %196, %c2_i32_60 : i32
    %198 = arith.index_cast %197 : i32 to index
    %199 = memref.load %arg1[%198] : memref<32xi32, #tpu.memory_space<smem>>
    %c4_i32_61 = arith.constant 4 : i32
    %200 = arith.muli %187, %c4_i32_61 : i32
    %c3_i32_62 = arith.constant 3 : i32
    %201 = arith.addi %200, %c3_i32_62 : i32
    %202 = arith.index_cast %201 : i32 to index
    %203 = memref.load %arg1[%202] : memref<32xi32, #tpu.memory_space<smem>>
    %204 = tpu.iota {dimensions = array<i32: 1>} : vector<8x24xi32>
    %205 = arith.sitofp %204 : vector<8x24xi32> to vector<8x24xf32>
    %206 = tpu.iota {dimensions = array<i32: 0>} : vector<8x24xi32>
    %207 = arith.sitofp %206 : vector<8x24xi32> to vector<8x24xf32>
    %208 = arith.sitofp %203 : i32 to f32
    %209 = vector.broadcast %208 : f32 to vector<8x24xf32>
    %210 = arith.mulf %207, %209 : vector<8x24xf32>
    %cst_63 = arith.constant 8.000000e+00 : f32
    %211 = vector.broadcast %cst_63 : f32 to vector<8x24xf32>
    %212 = arith.divf %210, %211 : vector<8x24xf32>
    %cst_64 = arith.constant 1.000000e-03 : f32
    %213 = vector.broadcast %cst_64 : f32 to vector<8x24xf32>
    %214 = arith.addf %212, %213 : vector<8x24xf32>
    %215 = math.floor %214 : vector<8x24xf32>
    %cst_65 = arith.constant 1.000000e+00 : f32
    %216 = vector.broadcast %cst_65 : f32 to vector<8x24xf32>
    %217 = arith.addf %207, %216 : vector<8x24xf32>
    %218 = vector.broadcast %208 : f32 to vector<8x24xf32>
    %219 = arith.mulf %217, %218 : vector<8x24xf32>
    %cst_66 = arith.constant 8.000000e+00 : f32
    %220 = vector.broadcast %cst_66 : f32 to vector<8x24xf32>
    %221 = arith.divf %219, %220 : vector<8x24xf32>
    %cst_67 = arith.constant 1.000000e-03 : f32
    %222 = vector.broadcast %cst_67 : f32 to vector<8x24xf32>
    %223 = arith.subf %221, %222 : vector<8x24xf32>
    %224 = math.ceil %223 : vector<8x24xf32>
    %225 = arith.sitofp %195 : i32 to f32
    %226 = vector.broadcast %225 : f32 to vector<8x24xf32>
    %227 = arith.subf %205, %226 : vector<8x24xf32>
    %228 = arith.cmpf oge, %227, %215 : vector<8x24xf32>
    %229 = arith.cmpf olt, %227, %224 : vector<8x24xf32>
    %230 = arith.andi %228, %229 : vector<8x24xi1>
    %231 = arith.subf %224, %215 : vector<8x24xf32>
    %cst_68 = arith.constant 1.000000e+00 : f32
    %232 = vector.broadcast %cst_68 : f32 to vector<8x24xf32>
    %233 = arith.maximumf %231, %232 : vector<8x24xf32>
    %cst_69 = arith.constant 1.000000e+00 : f32
    %234 = vector.broadcast %cst_69 : f32 to vector<8x24xf32>
    %235 = arith.divf %234, %233 : vector<8x24xf32>
    %cst_70 = arith.constant 0.000000e+00 : f32
    %236 = vector.broadcast %cst_70 : f32 to vector<8x24xf32>
    %237 = arith.select %230, %235, %236 : vector<8x24xi1>, vector<8x24xf32>
    %238 = tpu.iota {dimensions = array<i32: 1>} : vector<8x24xi32>
    %239 = arith.sitofp %238 : vector<8x24xi32> to vector<8x24xf32>
    %240 = tpu.iota {dimensions = array<i32: 0>} : vector<8x24xi32>
    %241 = arith.sitofp %240 : vector<8x24xi32> to vector<8x24xf32>
    %242 = arith.sitofp %199 : i32 to f32
    %243 = vector.broadcast %242 : f32 to vector<8x24xf32>
    %244 = arith.mulf %241, %243 : vector<8x24xf32>
    %cst_71 = arith.constant 8.000000e+00 : f32
    %245 = vector.broadcast %cst_71 : f32 to vector<8x24xf32>
    %246 = arith.divf %244, %245 : vector<8x24xf32>
    %cst_72 = arith.constant 1.000000e-03 : f32
    %247 = vector.broadcast %cst_72 : f32 to vector<8x24xf32>
    %248 = arith.addf %246, %247 : vector<8x24xf32>
    %249 = math.floor %248 : vector<8x24xf32>
    %cst_73 = arith.constant 1.000000e+00 : f32
    %250 = vector.broadcast %cst_73 : f32 to vector<8x24xf32>
    %251 = arith.addf %241, %250 : vector<8x24xf32>
    %252 = vector.broadcast %242 : f32 to vector<8x24xf32>
    %253 = arith.mulf %251, %252 : vector<8x24xf32>
    %cst_74 = arith.constant 8.000000e+00 : f32
    %254 = vector.broadcast %cst_74 : f32 to vector<8x24xf32>
    %255 = arith.divf %253, %254 : vector<8x24xf32>
    %cst_75 = arith.constant 1.000000e-03 : f32
    %256 = vector.broadcast %cst_75 : f32 to vector<8x24xf32>
    %257 = arith.subf %255, %256 : vector<8x24xf32>
    %258 = math.ceil %257 : vector<8x24xf32>
    %259 = arith.sitofp %191 : i32 to f32
    %260 = vector.broadcast %259 : f32 to vector<8x24xf32>
    %261 = arith.subf %239, %260 : vector<8x24xf32>
    %262 = arith.cmpf oge, %261, %249 : vector<8x24xf32>
    %263 = arith.cmpf olt, %261, %258 : vector<8x24xf32>
    %264 = arith.andi %262, %263 : vector<8x24xi1>
    %265 = arith.subf %258, %249 : vector<8x24xf32>
    %cst_76 = arith.constant 1.000000e+00 : f32
    %266 = vector.broadcast %cst_76 : f32 to vector<8x24xf32>
    %267 = arith.maximumf %265, %266 : vector<8x24xf32>
    %cst_77 = arith.constant 1.000000e+00 : f32
    %268 = vector.broadcast %cst_77 : f32 to vector<8x24xf32>
    %269 = arith.divf %268, %267 : vector<8x24xf32>
    %cst_78 = arith.constant 0.000000e+00 : f32
    %270 = vector.broadcast %cst_78 : f32 to vector<8x24xf32>
    %271 = arith.select %264, %269, %270 : vector<8x24xi1>, vector<8x24xf32>
    %cst_79 = arith.constant dense<0.000000e+00> : vector<144x8xf32>
    %272 = tpu.matmul %1, %237, %cst_79 {dimension_numbers = #tpu.dot_dimension_numbers<[1], [1], [0], [0], [0, 0, 1, 0], [], []>} : vector<144x24xf32>, vector<8x24xf32>, vector<144x8xf32> -> vector<144x8xf32>
    %273 = vector.shape_cast %272 : vector<144x8xf32> to vector<6x24x8xf32>
    %274 = vector.shape_cast %271 : vector<8x24xf32> to vector<1x8x24xf32>
    %275 = vector.broadcast %274 : vector<1x8x24xf32> to vector<6x8x24xf32>
    %cst_80 = arith.constant dense<0.000000e+00> : vector<6x8x8xf32>
    %276 = tpu.matmul %275, %273, %cst_80 {dimension_numbers = #tpu.dot_dimension_numbers<[2], [1], [1], [2], [0, 0, 0, 1, 1, 2], [0], [0]>} : vector<6x8x24xf32>, vector<6x24x8xf32>, vector<6x8x8xf32> -> vector<6x8x8xf32>
    %277 = vector.shape_cast %276 : vector<6x8x8xf32> to vector<48x8xf32>
    %c4_i32_81 = arith.constant 4 : i32
    %278 = arith.muli %arg0, %c4_i32_81 : i32
    %c3_i32_82 = arith.constant 3 : i32
    %279 = arith.addi %278, %c3_i32_82 : i32
    %c4_i32_83 = arith.constant 4 : i32
    %280 = arith.muli %279, %c4_i32_83 : i32
    %c0_i32_84 = arith.constant 0 : i32
    %281 = arith.addi %280, %c0_i32_84 : i32
    %282 = arith.index_cast %281 : i32 to index
    %283 = memref.load %arg1[%282] : memref<32xi32, #tpu.memory_space<smem>>
    %c4_i32_85 = arith.constant 4 : i32
    %284 = arith.muli %279, %c4_i32_85 : i32
    %c1_i32_86 = arith.constant 1 : i32
    %285 = arith.addi %284, %c1_i32_86 : i32
    %286 = arith.index_cast %285 : i32 to index
    %287 = memref.load %arg1[%286] : memref<32xi32, #tpu.memory_space<smem>>
    %c4_i32_87 = arith.constant 4 : i32
    %288 = arith.muli %279, %c4_i32_87 : i32
    %c2_i32_88 = arith.constant 2 : i32
    %289 = arith.addi %288, %c2_i32_88 : i32
    %290 = arith.index_cast %289 : i32 to index
    %291 = memref.load %arg1[%290] : memref<32xi32, #tpu.memory_space<smem>>
    %c4_i32_89 = arith.constant 4 : i32
    %292 = arith.muli %279, %c4_i32_89 : i32
    %c3_i32_90 = arith.constant 3 : i32
    %293 = arith.addi %292, %c3_i32_90 : i32
    %294 = arith.index_cast %293 : i32 to index
    %295 = memref.load %arg1[%294] : memref<32xi32, #tpu.memory_space<smem>>
    %296 = tpu.iota {dimensions = array<i32: 1>} : vector<8x24xi32>
    %297 = arith.sitofp %296 : vector<8x24xi32> to vector<8x24xf32>
    %298 = tpu.iota {dimensions = array<i32: 0>} : vector<8x24xi32>
    %299 = arith.sitofp %298 : vector<8x24xi32> to vector<8x24xf32>
    %300 = arith.sitofp %295 : i32 to f32
    %301 = vector.broadcast %300 : f32 to vector<8x24xf32>
    %302 = arith.mulf %299, %301 : vector<8x24xf32>
    %cst_91 = arith.constant 8.000000e+00 : f32
    %303 = vector.broadcast %cst_91 : f32 to vector<8x24xf32>
    %304 = arith.divf %302, %303 : vector<8x24xf32>
    %cst_92 = arith.constant 1.000000e-03 : f32
    %305 = vector.broadcast %cst_92 : f32 to vector<8x24xf32>
    %306 = arith.addf %304, %305 : vector<8x24xf32>
    %307 = math.floor %306 : vector<8x24xf32>
    %cst_93 = arith.constant 1.000000e+00 : f32
    %308 = vector.broadcast %cst_93 : f32 to vector<8x24xf32>
    %309 = arith.addf %299, %308 : vector<8x24xf32>
    %310 = vector.broadcast %300 : f32 to vector<8x24xf32>
    %311 = arith.mulf %309, %310 : vector<8x24xf32>
    %cst_94 = arith.constant 8.000000e+00 : f32
    %312 = vector.broadcast %cst_94 : f32 to vector<8x24xf32>
    %313 = arith.divf %311, %312 : vector<8x24xf32>
    %cst_95 = arith.constant 1.000000e-03 : f32
    %314 = vector.broadcast %cst_95 : f32 to vector<8x24xf32>
    %315 = arith.subf %313, %314 : vector<8x24xf32>
    %316 = math.ceil %315 : vector<8x24xf32>
    %317 = arith.sitofp %287 : i32 to f32
    %318 = vector.broadcast %317 : f32 to vector<8x24xf32>
    %319 = arith.subf %297, %318 : vector<8x24xf32>
    %320 = arith.cmpf oge, %319, %307 : vector<8x24xf32>
    %321 = arith.cmpf olt, %319, %316 : vector<8x24xf32>
    %322 = arith.andi %320, %321 : vector<8x24xi1>
    %323 = arith.subf %316, %307 : vector<8x24xf32>
    %cst_96 = arith.constant 1.000000e+00 : f32
    %324 = vector.broadcast %cst_96 : f32 to vector<8x24xf32>
    %325 = arith.maximumf %323, %324 : vector<8x24xf32>
    %cst_97 = arith.constant 1.000000e+00 : f32
    %326 = vector.broadcast %cst_97 : f32 to vector<8x24xf32>
    %327 = arith.divf %326, %325 : vector<8x24xf32>
    %cst_98 = arith.constant 0.000000e+00 : f32
    %328 = vector.broadcast %cst_98 : f32 to vector<8x24xf32>
    %329 = arith.select %322, %327, %328 : vector<8x24xi1>, vector<8x24xf32>
    %330 = tpu.iota {dimensions = array<i32: 1>} : vector<8x24xi32>
    %331 = arith.sitofp %330 : vector<8x24xi32> to vector<8x24xf32>
    %332 = tpu.iota {dimensions = array<i32: 0>} : vector<8x24xi32>
    %333 = arith.sitofp %332 : vector<8x24xi32> to vector<8x24xf32>
    %334 = arith.sitofp %291 : i32 to f32
    %335 = vector.broadcast %334 : f32 to vector<8x24xf32>
    %336 = arith.mulf %333, %335 : vector<8x24xf32>
    %cst_99 = arith.constant 8.000000e+00 : f32
    %337 = vector.broadcast %cst_99 : f32 to vector<8x24xf32>
    %338 = arith.divf %336, %337 : vector<8x24xf32>
    %cst_100 = arith.constant 1.000000e-03 : f32
    %339 = vector.broadcast %cst_100 : f32 to vector<8x24xf32>
    %340 = arith.addf %338, %339 : vector<8x24xf32>
    %341 = math.floor %340 : vector<8x24xf32>
    %cst_101 = arith.constant 1.000000e+00 : f32
    %342 = vector.broadcast %cst_101 : f32 to vector<8x24xf32>
    %343 = arith.addf %333, %342 : vector<8x24xf32>
    %344 = vector.broadcast %334 : f32 to vector<8x24xf32>
    %345 = arith.mulf %343, %344 : vector<8x24xf32>
    %cst_102 = arith.constant 8.000000e+00 : f32
    %346 = vector.broadcast %cst_102 : f32 to vector<8x24xf32>
    %347 = arith.divf %345, %346 : vector<8x24xf32>
    %cst_103 = arith.constant 1.000000e-03 : f32
    %348 = vector.broadcast %cst_103 : f32 to vector<8x24xf32>
    %349 = arith.subf %347, %348 : vector<8x24xf32>
    %350 = math.ceil %349 : vector<8x24xf32>
    %351 = arith.sitofp %283 : i32 to f32
    %352 = vector.broadcast %351 : f32 to vector<8x24xf32>
    %353 = arith.subf %331, %352 : vector<8x24xf32>
    %354 = arith.cmpf oge, %353, %341 : vector<8x24xf32>
    %355 = arith.cmpf olt, %353, %350 : vector<8x24xf32>
    %356 = arith.andi %354, %355 : vector<8x24xi1>
    %357 = arith.subf %350, %341 : vector<8x24xf32>
    %cst_104 = arith.constant 1.000000e+00 : f32
    %358 = vector.broadcast %cst_104 : f32 to vector<8x24xf32>
    %359 = arith.maximumf %357, %358 : vector<8x24xf32>
    %cst_105 = arith.constant 1.000000e+00 : f32
    %360 = vector.broadcast %cst_105 : f32 to vector<8x24xf32>
    %361 = arith.divf %360, %359 : vector<8x24xf32>
    %cst_106 = arith.constant 0.000000e+00 : f32
    %362 = vector.broadcast %cst_106 : f32 to vector<8x24xf32>
    %363 = arith.select %356, %361, %362 : vector<8x24xi1>, vector<8x24xf32>
    %cst_107 = arith.constant dense<0.000000e+00> : vector<144x8xf32>
    %364 = tpu.matmul %1, %329, %cst_107 {dimension_numbers = #tpu.dot_dimension_numbers<[1], [1], [0], [0], [0, 0, 1, 0], [], []>} : vector<144x24xf32>, vector<8x24xf32>, vector<144x8xf32> -> vector<144x8xf32>
    %365 = vector.shape_cast %364 : vector<144x8xf32> to vector<6x24x8xf32>
    %366 = vector.shape_cast %363 : vector<8x24xf32> to vector<1x8x24xf32>
    %367 = vector.broadcast %366 : vector<1x8x24xf32> to vector<6x8x24xf32>
    %cst_108 = arith.constant dense<0.000000e+00> : vector<6x8x8xf32>
    %368 = tpu.matmul %367, %365, %cst_108 {dimension_numbers = #tpu.dot_dimension_numbers<[2], [1], [1], [2], [0, 0, 0, 1, 1, 2], [0], [0]>} : vector<6x8x24xf32>, vector<6x24x8xf32>, vector<6x8x8xf32> -> vector<6x8x8xf32>
    %369 = vector.shape_cast %368 : vector<6x8x8xf32> to vector<48x8xf32>
    %370 = tpu.concatenate %93, %185, %277, %369 in 1 : vector<48x8xf32>, vector<48x8xf32>, vector<48x8xf32>, vector<48x8xf32> -> vector<48x32xf32>
    %c0_109 = arith.constant 0 : index
    %c0_110 = arith.constant 0 : index
    %c0_111 = arith.constant 0 : index
    %371 = vector.load %arg3[%c0_109, %c0_110, %c0_111] : memref<1x48x32xf32, #tpu.memory_space<vmem>>, vector<1x48x32xf32>
    %372 = vector.shape_cast %371 : vector<1x48x32xf32> to vector<48x32xf32>
    %373 = vector.shape_cast %370 : vector<48x32xf32> to vector<1x48x32xf32>
    tpu.vector_store %arg3[%c0_109, %c0_110, %c0_111], %373 {strides = array<i32>} : memref<1x48x32xf32, #tpu.memory_space<vmem>>, vector<1x48x32xf32>,
    return
  }
  func.func @transform_0(%arg0: i32, %arg1: memref<32xi32, #tpu.memory_space<smem>>) -> (i32, i32, i32, i32) {
    %c0_i32 = arith.constant 0 : i32
    %c0_i32_0 = arith.constant 0 : i32
    %c0_i32_1 = arith.constant 0 : i32
    %c0_i32_2 = arith.constant 0 : i32
    %c0_i32_3 = arith.constant 0 : i32
    return %c0_i32, %c0_i32_0, %c0_i32_1, %c0_i32_2 : i32, i32, i32, i32
  }
  func.func @transform_1(%arg0: i32, %arg1: memref<32xi32, #tpu.memory_space<smem>>) -> (i32, i32, i32) {
    %c0_i32 = arith.constant 0 : i32
    %c0_i32_0 = arith.constant 0 : i32
    %c0_i32_1 = arith.constant 0 : i32
    return %arg0, %c0_i32, %c0_i32_0 : i32, i32, i32
  }
}

</mosaic_0001>

<llo_original>
// kernel: _lambda_.1
$region0: #{_lambda_.1}
  #allocation0 [shape = 'u32[]', space=smem, size = 0x4, offset = 0x4, fixed_abs, tag = 'smem constant byte address 0x4 - core index']
  #allocation1 [shape = 'u32[72,128]{1,0:T(1,128)}', space=vmem, size = 0x9000, scoped, tag = 'internal scratch']
  #allocation2 [shape = 's32[1]{0}', space=sflag, size = 0x4, scoped, tag = 'scoped memory for _lambda_.1']
  #allocation3 [shape = 'u8[512]{0}', space=smem, size = 0x200, scoped, tag = 'prefetched SMEM operand 0']
  %s0 = inlined_call_operand.vmem [shape: s32[32], index: 0, kind: input, shape index: {}]
  %s1 = inlined_call_operand.vmem [shape: f32[2,3,24,24], index: 1, kind: input, shape index: {}]
  %s2 = inlined_call_operand.vmem [shape: f32[2,48,32], index: 2, kind: output, shape index: {}]
  %s3 = sld [smem:[#allocation0]]
  $region37: #{_lambda_.1} parent=0
    _
  %s5 = ssub.s32 1, %s3
  %s6 = scalar_select 0, %s5, %s3
  %s8 = sshll.u32 %s0, 4
  %s9 = int_to_ptr.vmem [resolvable:$true] %s8
  %11 = dma.vmem_to_smem %s9, 16, [#allocation3], [#allocation2]
  %13 = dma.done [#allocation2], 16
  %14 = sfence
  loop: start=0, step=1, limit=4
  $region2: #{_lambda_.1} parent=0 // loop_pre_header
    _
  $region3: #{_lambda_.1} parent=0 // loop_header
    %s16 = sphi 0, %s20
    %p17 = scmp.ge.s32.totalorder %s16, 4
    %s24 = sphi 0, %s24
    %s26 = sphi 0, %s24
    %s27 = sphi 0, %s26
    %s41 = sphi 0, %s27
    %s47 = sphi 0, %s49
    %s50 = sphi 0, %s47
    %s51 = sphi 0, %s50
    %s67 = sphi 0, %s51
  $region4: #{_lambda_.1} parent=0 // loop_header_branch
    %19 = sbr.rel (%p17) target = $region8
  $region5: #{_lambda_.1} parent=0 // loop_body
    %s21 = ssub.s32 %s16, 1
    %s22 = ssub.s32 %s16, 2
    %s23 = sadd.s32 %s16, 1
    %s25 = sadd.s32 %s24, 1
    %p28 = scmp.eq.s32.totalorder %s16, 1
    %p29 = scmp.ne.s32.totalorder %s24, %s26
    %p30 = scmp.eq.s32.totalorder %s16, 0
    %p31 = por %p29, %p30
    %p32 = scmp.ne.s32.totalorder %s24, %s26
    %p33 = scmp.eq.s32.totalorder %s21, 1
    %p34 = por %p32, %p33
    %p35 = scmp.ne.s32.totalorder %s26, %s27
    %p36 = scmp.eq.s32.totalorder %s21, 0
    %p37 = por %p35, %p36
    %p38 = scmp.ne.s32.totalorder %s26, %s27
    %p39 = scmp.eq.s32.totalorder %s22, 1
    %p40 = por %p38, %p39
    %p42 = scmp.ne.s32.totalorder %s27, %s41
    %p43 = scmp.eq.s32.totalorder %s22, 0
    %p44 = por %p42, %p43
    %s45 = ssub.s32 %s16, %s23
    %p46 = scmp.eq.s32.totalorder %s45, 0
    %s48 = sadd.s32 %s47, 1
    %s49 = scalar_select %p46, %s47, %s48
    %p52 = pneg %p46
    %p53 = scmp.eq.s32.totalorder %s16, 1
    %p54 = por %p52, %p53
    %p55 = scmp.ne.s32.totalorder %s47, %s50
    %p56 = scmp.eq.s32.totalorder %s16, 0
    %p57 = por %p55, %p56
    %p58 = scmp.ne.s32.totalorder %s47, %s50
    %p59 = scmp.eq.s32.totalorder %s21, 1
    %p60 = por %p58, %p59
    %p61 = scmp.ne.s32.totalorder %s50, %s51
    %p62 = scmp.eq.s32.totalorder %s21, 0
    %p63 = por %p61, %p62
    %p64 = scmp.ne.s32.totalorder %s50, %s51
    %p65 = scmp.eq.s32.totalorder %s22, 1
    %p66 = por %p64, %p65
    %p68 = scmp.ne.s32.totalorder %s51, %s67
    %p69 = scmp.eq.s32.totalorder %s22, 0
    %p70 = por %p68, %p69
    %p71 = scmp.le.s32.totalorder 1, %s16
    %p72 = scmp.lt.s32.totalorder %s16, 3
    %p73 = pnand %p71, %p72
    %p74 = pneg %p73
    // Predicated region
    $region9: #{_lambda_.1} parent=5 // pred_check
      _
    $region10: #{_lambda_.1} parent=5 // pred_check_branch
      %76 = sbr.rel (%p73) target = $region12
    $region11: #{_lambda_.1} parent=5 // pred_region
      %s77 = ssub.s32 %s16, 1
      // Predicated region
      $region13: #{_lambda_.1} parent=11 // pred_check
        %p78 = pneg %p37
      $region14: #{_lambda_.1} parent=11 // pred_check_branch
        %80 = sbr.rel (%p78) target = $region16
      $region15: #{_lambda_.1} parent=11 // pred_region
        _
      $region16: #{_lambda_.1} parent=11 // pred_fallthru
        _
    $region12: #{_lambda_.1} parent=5 // pred_fallthru
      _
    %p81 = scmp.lt.s32.totalorder %s16, 2
    // Predicated region
    $region17: #{_lambda_.1} parent=5 // pred_check
      %p82 = pneg %p81
    $region18: #{_lambda_.1} parent=5 // pred_check_branch
      %84 = sbr.rel (%p82) target = $region20
    $region19: #{_lambda_.1} parent=5 // pred_region
      _
    $region20: #{_lambda_.1} parent=5 // pred_fallthru
      _
    %p85 = scmp.le.s32.totalorder 1, %s16
    %p86 = scmp.lt.s32.totalorder %s16, 3
    %p87 = pnand %p85, %p86
    %p88 = pneg %p87
    // Predicated region
    $region21: #{_lambda_.1} parent=5 // pred_check
      _
    $region22: #{_lambda_.1} parent=5 // pred_check_branch
      %90 = sbr.rel (%p87) target = $region24
    $region23: #{_lambda_.1} parent=5 // pred_region
      %s91 = ssub.s32 %s16, 1
      %p92 = pneg %p37
      %p93 = pneg %p34
      %p94 = pneg %p63
      %p95 = pneg %p60
      %p96 = scmp.lt.s32.totalorder %s21, 1
      %s97 = scalar_select %p96, %s21, 1
      %s98 = smul.addr %s97, 6
      %s99 = smul.addr %s98, 8
      %s100 = scalar_lea.vmem %s2, %s99
      %p101 = scmp.lt.s32.totalorder %s21, 1
      %s102 = scalar_select %p101, %s21, 1
      %s103 = smul.addr %s102, 6
      %s104 = smul.addr %s103, 8
      %s105 = scalar_lea.vmem %s2, %s104
      %v106 = vld [vmem:[%s1] sm:$0xff]
      %v107 = vld [vmem:[%s1 + $0x8] sm:$0xff]
      %v108 = vld [vmem:[%s1 + $0x10] sm:$0xff]
      %v109 = vld [vmem:[%s1 + $0x18] sm:$0xff]
      %v110 = vld [vmem:[%s1 + $0x20] sm:$0xff]
      %v111 = vld [vmem:[%s1 + $0x28] sm:$0xff]
      %v112 = vld [vmem:[%s1 + $0x30] sm:$0xff]
      %v113 = vld [vmem:[%s1 + $0x38] sm:$0xff]
      %v114 = vld [vmem:[%s1 + $0x40] sm:$0xff]
      %v115 = vld [vmem:[%s1 + $0x48] sm:$0xff]
      %v116 = vld [vmem:[%s1 + $0x50] sm:$0xff]
      %v117 = vld [vmem:[%s1 + $0x58] sm:$0xff]
      %v118 = vld [vmem:[%s1 + $0x60] sm:$0xff]
      %v119 = vld [vmem:[%s1 + $0x68] sm:$0xff]
      %v120 = vld [vmem:[%s1 + $0x70] sm:$0xff]
      %v121 = vld [vmem:[%s1 + $0x78] sm:$0xff]
      %v122 = vld [vmem:[%s1 + $0x80] sm:$0xff]
      %v123 = vld [vmem:[%s1 + $0x88] sm:$0xff]
      %s124 = smul.u32 %s21, 16
      %s125 = sld [smem:[#allocation3 + %s124]]
      %s126 = sadd.s32 %s124, 1
      %s127 = sld [smem:[#allocation3 + %s126]]
      %s128 = sadd.s32 %s124, 2
      %s129 = sld [smem:[#allocation3 + %s128]]
      %s130 = sadd.s32 %s124, 3
      %s131 = sld [smem:[#allocation3 + %s130]]
      %v132 = vlaneseq
      %v133 = vand.u32 %v132, 127
      %v134 = vcvt.s32.f32 %v133
      %v135 = vlaneseq
      %v136 = vshrl.u32 %v135, 7
      %v137 = vcvt.s32.f32 %v136
      %s138 = scvt.s32.f32 %s131
      %v139 = vstv %s138
      %v140 = vmul.f32 %v137, %v139
      %v141 = vrcp.pop 8.0
      %v142 = vmul.f32 8.0, %v141
      %v143 = vsub.f32 1.0, %v142
      %v144 = vmul.f32 %v141, %v143
      %v145 = vadd.f32 %v141, %v144
      %vm146 = vweird.f32 %v141
      %v147 = vsel %vm146, %v141, %v145
      %v148 = vmul.f32 %v140, %v147
      %v149 = vadd.f32 %v148, 0.001
      %v150 = vfloor.f32 %v149
      %v151 = vadd.f32 %v137, 1.0
      %v152 = vmul.f32 %v151, %v139
      %v153 = vmul.f32 %v152, %v147
      %v154 = vsub.f32 %v153, 0.001
      %v155 = vceil.f32 %v154
      %s156 = scvt.s32.f32 %s127
      %v157 = vstv %s156
      %v158 = vsub.f32 %v134, %v157
      %vm159 = vcmp.ge.f32.partialorder %v158, %v150
      %vm160 = vcmp.lt.f32.partialorder %v158, %v155
      %vm161 = vmand %vm159, %vm160
      %v162 = vsub.f32 %v155, %v150
      %v163 = vmax.f32 %v162, 1.0
      %v164 = vrcp.pop %v163
      %v165 = vmul.f32 %v163, %v164
      %v166 = vsub.f32 1.0, %v165
      %v167 = vmul.f32 %v164, %v166
      %v168 = vadd.f32 %v164, %v167
      %vm169 = vweird.f32 %v163
      %vm170 = vweird.f32 %v164
      %vm171 = vmor %vm169, %vm170
      %v172 = vsel %vm171, %v164, %v168
      %v173 = vand.u32 2147483647, %v163
      %vm174 = vcmp.eq.f32.partialorder %v173, 8.507059e+37
      %v175 = vand.u32 %v163, 2147483648
      %v176 = vor.u32 1.1754944e-38, %v175
      %v177 = vsel %vm174, %v176, %v172
      %v178 = vmul.f32 1.0, %v177
      %v179 = vsel %vm161, %v178, 0.0
      %s180 = scvt.s32.f32 %s129
      %v181 = vstv %s180
      %v182 = vmul.f32 %v137, %v181
      %v183 = vmul.f32 %v182, %v147
      %v184 = vadd.f32 %v183, 0.001
      %v185 = vfloor.f32 %v184
      %v186 = vmul.f32 %v151, %v181
      %v187 = vmul.f32 %v186, %v147
      %v188 = vsub.f32 %v187, 0.001
      %v189 = vceil.f32 %v188
      %s190 = scvt.s32.f32 %s125
      %v191 = vstv %s190
      %v192 = vsub.f32 %v134, %v191
      %vm193 = vcmp.ge.f32.partialorder %v192, %v185
      %vm194 = vcmp.lt.f32.partialorder %v192, %v189
      %vm195 = vmand %vm193, %vm194
      %v196 = vsub.f32 %v189, %v185
      %v197 = vmax.f32 %v196, 1.0
      %v198 = vrcp.pop %v197
      %v199 = vmul.f32 %v197, %v198
      %v200 = vsub.f32 1.0, %v199
      %v201 = vmul.f32 %v198, %v200
      %v202 = vadd.f32 %v198, %v201
      %vm203 = vweird.f32 %v197
      %vm204 = vweird.f32 %v198
      %vm205 = vmor %vm203, %vm204
      %v206 = vsel %vm205, %v198, %v202
      %v207 = vand.u32 2147483647, %v197
      %vm208 = vcmp.eq.f32.partialorder %v207, 8.507059e+37
      %v209 = vand.u32 %v197, 2147483648
      %v210 = vor.u32 1.1754944e-38, %v209
      %v211 = vsel %vm208, %v210, %v206
      %v212 = vmul.f32 1.0, %v211
      %v213 = vsel %vm195, %v212, 0.0
      %vm214 = vcmask 195584
      %v216 = vsel %vm214, %v106, 0
      %v219 = vsel %vm214, %v107, 0
      %v222 = vsel %vm214, %v108, 0
      %v225 = vsel %vm214, %v109, 0
      %v228 = vsel %vm214, %v110, 0
      %v231 = vsel %vm214, %v111, 0
      %v234 = vsel %vm214, %v112, 0
      %v237 = vsel %vm214, %v113, 0
      %v240 = vsel %vm214, %v114, 0
      %v243 = vsel %vm214, %v115, 0
      %v246 = vsel %vm214, %v116, 0
      %v249 = vsel %vm214, %v117, 0
      %v252 = vsel %vm214, %v118, 0
      %v255 = vsel %vm214, %v119, 0
      %v258 = vsel %vm214, %v120, 0
      %v261 = vsel %vm214, %v121, 0
      %v264 = vsel %vm214, %v122, 0
      %v267 = vsel %vm214, %v123, 0
      %v270 = vsel %vm214, %v179, 0
      %272 = vmatpush.xpose.msra.mxu0 0.0
      %273 = vmatpush.xpose.msra.mxu0 0.0
      %274 = vmatpush.xpose.msra.mxu0 0.0
      %275 = vmatpush.xpose.msra.mxu0 0.0
      %276 = vmatpush.xpose.msra.mxu0 0.0
      %277 = vmatpush.xpose.msra.mxu0 0.0
      %278 = vmatpush.xpose.msra.mxu0 0.0
      %279 = vmatpush.xpose.msra.mxu0 0.0
      %280 = vmatpush.xpose.msra.mxu0 0.0
      %281 = vmatpush.xpose.msra.mxu0 0.0
      %282 = vmatpush.xpose.msra.mxu0 0.0
      %283 = vmatpush.xpose.msra.mxu0 0.0
      %284 = vmatpush.xpose.msra.mxu0 0.0
      %285 = vmatpush.xpose.msra.mxu0 0.0
      %286 = vmatpush.xpose.msra.mxu0 0.0
      %287 = vmatpush.xpose.msra.mxu0 %v270
      %288 = vmatmul.f32.gmra.mxu0 %v216
      %v289 = vpop.f32.mrf.mxu0
      %v290 = vadd.f32 0.0, %v289
      %291 = vmatmul.f32.gmra.mxu0 %v219
      %v292 = vpop.f32.mrf.mxu0
      %v293 = vadd.f32 0.0, %v292
      %294 = vmatmul.f32.gmra.mxu0 %v222
      %v295 = vpop.f32.mrf.mxu0
      %v296 = vadd.f32 0.0, %v295
      %297 = vmatmul.f32.gmra.mxu0 %v225
      %v298 = vpop.f32.mrf.mxu0
      %v299 = vadd.f32 0.0, %v298
      %300 = vmatmul.f32.gmra.mxu0 %v228
      %v301 = vpop.f32.mrf.mxu0
      %v302 = vadd.f32 0.0, %v301
      %303 = vmatmul.f32.gmra.mxu0 %v231
      %v304 = vpop.f32.mrf.mxu0
      %v305 = vadd.f32 0.0, %v304
      %306 = vmatmul.f32.gmra.mxu0 %v234
      %v307 = vpop.f32.mrf.mxu0
      %v308 = vadd.f32 0.0, %v307
      %309 = vmatmul.f32.gmra.mxu0 %v237
      %v310 = vpop.f32.mrf.mxu0
      %v311 = vadd.f32 0.0, %v310
      %312 = vmatmul.f32.gmra.mxu0 %v240
      %v313 = vpop.f32.mrf.mxu0
      %v314 = vadd.f32 0.0, %v313
      %315 = vmatmul.f32.gmra.mxu0 %v243
      %v316 = vpop.f32.mrf.mxu0
      %v317 = vadd.f32 0.0, %v316
      %318 = vmatmul.f32.gmra.mxu0 %v246
      %v319 = vpop.f32.mrf.mxu0
      %v320 = vadd.f32 0.0, %v319
      %321 = vmatmul.f32.gmra.mxu0 %v249
      %v322 = vpop.f32.mrf.mxu0
      %v323 = vadd.f32 0.0, %v322
      %324 = vmatmul.f32.gmra.mxu0 %v252
      %v325 = vpop.f32.mrf.mxu0
      %v326 = vadd.f32 0.0, %v325
      %327 = vmatmul.f32.gmra.mxu0 %v255
      %v328 = vpop.f32.mrf.mxu0
      %v329 = vadd.f32 0.0, %v328
      %330 = vmatmul.f32.gmra.mxu0 %v258
      %v331 = vpop.f32.mrf.mxu0
      %v332 = vadd.f32 0.0, %v331
      %333 = vmatmul.f32.gmra.mxu0 %v261
      %v334 = vpop.f32.mrf.mxu0
      %v335 = vadd.f32 0.0, %v334
      %336 = vmatmul.f32.gmra.mxu0 %v264
      %v337 = vpop.f32.mrf.mxu0
      %v338 = vadd.f32 0.0, %v337
      %339 = vmatmul.f32.gmra.mxu0 %v267
      %v340 = vpop.f32.mrf.mxu0
      %v341 = vadd.f32 0.0, %v340
      %342 = vdwg.mxu0
      %v344 = vsel %vm214, %v213, 0
      %346 = vmatpush.msra.mxu0 0.0
      %347 = vmatpush.msra.mxu0 0.0
      %348 = vmatpush.msra.mxu0 0.0
      %349 = vmatpush.msra.mxu0 0.0
      %350 = vmatpush.msra.mxu0 0.0
      %351 = vmatpush.msra.mxu0 0.0
      %352 = vmatpush.msra.mxu0 0.0
      %353 = vmatpush.msra.mxu0 0.0
      %354 = vmatpush.msra.mxu0 0.0
      %355 = vmatpush.msra.mxu0 0.0
      %356 = vmatpush.msra.mxu0 0.0
      %357 = vmatpush.msra.mxu0 0.0
      %358 = vmatpush.msra.mxu0 0.0
      %359 = vmatpush.msra.mxu0 %v296
      %360 = vmatpush.msra.mxu0 %v293
      %361 = vmatpush.msra.mxu0 %v290
      %362 = vmatmul.f32.gmra.mxu0 %v344
      %v363 = vpop.f32.mrf.mxu0
      %v364 = vadd.f32 0.0, %v363
      %365 = vdwg.mxu0
      %366 = vmatpush.msra.mxu0 0.0
      %367 = vmatpush.msra.mxu0 0.0
      %368 = vmatpush.msra.mxu0 0.0
      %369 = vmatpush.msra.mxu0 0.0
      %370 = vmatpush.msra.mxu0 0.0
      %371 = vmatpush.msra.mxu0 0.0
      %372 = vmatpush.msra.mxu0 0.0
      %373 = vmatpush.msra.mxu0 0.0
      %374 = vmatpush.msra.mxu0 0.0
      %375 = vmatpush.msra.mxu0 0.0
      %376 = vmatpush.msra.mxu0 0.0
      %377 = vmatpush.msra.mxu0 0.0
      %378 = vmatpush.msra.mxu0 0.0
      %379 = vmatpush.msra.mxu0 %v305
      %380 = vmatpush.msra.mxu0 %v302
      %381 = vmatpush.msra.mxu0 %v299
      %382 = vmatmul.f32.gmra.mxu0 %v344
      %v383 = vpop.f32.mrf.mxu0
      %v384 = vadd.f32 0.0, %v383
      %385 = vdwg.mxu0
      %386 = vmatpush.msra.mxu0 0.0
      %387 = vmatpush.msra.mxu0 0.0
      %388 = vmatpush.msra.mxu0 0.0
      %389 = vmatpush.msra.mxu0 0.0
      %390 = vmatpush.msra.mxu0 0.0
      %391 = vmatpush.msra.mxu0 0.0
      %392 = vmatpush.msra.mxu0 0.0
      %393 = vmatpush.msra.mxu0 0.0
      %394 = vmatpush.msra.mxu0 0.0
      %395 = vmatpush.msra.mxu0 0.0
      %396 = vmatpush.msra.mxu0 0.0
      %397 = vmatpush.msra.mxu0 0.0
      %398 = vmatpush.msra.mxu0 0.0
      %399 = vmatpush.msra.mxu0 %v314
      %400 = vmatpush.msra.mxu0 %v311
      %401 = vmatpush.msra.mxu0 %v308
      %402 = vmatmul.f32.gmra.mxu0 %v344
      %v403 = vpop.f32.mrf.mxu0
      %v404 = vadd.f32 0.0, %v403
      %405 = vdwg.mxu0
      %406 = vmatpush.msra.mxu0 0.0
      %407 = vmatpush.msra.mxu0 0.0
      %408 = vmatpush.msra.mxu0 0.0
      %409 = vmatpush.msra.mxu0 0.0
      %410 = vmatpush.msra.mxu0 0.0
      %411 = vmatpush.msra.mxu0 0.0
      %412 = vmatpush.msra.mxu0 0.0
      %413 = vmatpush.msra.mxu0 0.0
      %414 = vmatpush.msra.mxu0 0.0
      %415 = vmatpush.msra.mxu0 0.0
      %416 = vmatpush.msra.mxu0 0.0
      %417 = vmatpush.msra.mxu0 0.0
      %418 = vmatpush.msra.mxu0 0.0
      %419 = vmatpush.msra.mxu0 %v323
      %420 = vmatpush.msra.mxu0 %v320
      %421 = vmatpush.msra.mxu0 %v317
      %422 = vmatmul.f32.gmra.mxu0 %v344
      %v423 = vpop.f32.mrf.mxu0
      %v424 = vadd.f32 0.0, %v423
      %425 = vdwg.mxu0
      %426 = vmatpush.msra.mxu0 0.0
      %427 = vmatpush.msra.mxu0 0.0
      %428 = vmatpush.msra.mxu0 0.0
      %429 = vmatpush.msra.mxu0 0.0
      %430 = vmatpush.msra.mxu0 0.0
      %431 = vmatpush.msra.mxu0 0.0
      %432 = vmatpush.msra.mxu0 0.0
      %433 = vmatpush.msra.mxu0 0.0
      %434 = vmatpush.msra.mxu0 0.0
      %435 = vmatpush.msra.mxu0 0.0
      %436 = vmatpush.msra.mxu0 0.0
      %437 = vmatpush.msra.mxu0 0.0
      %438 = vmatpush.msra.mxu0 0.0
      %439 = vmatpush.msra.mxu0 %v332
      %440 = vmatpush.msra.mxu0 %v329
      %441 = vmatpush.msra.mxu0 %v326
      %442 = vmatmul.f32.gmra.mxu0 %v344
      %v443 = vpop.f32.mrf.mxu0
      %v444 = vadd.f32 0.0, %v443
      %445 = vdwg.mxu0
      %446 = vmatpush.msra.mxu0 0.0
      %447 = vmatpush.msra.mxu0 0.0
      %448 = vmatpush.msra.mxu0 0.0
      %449 = vmatpush.msra.mxu0 0.0
      %450 = vmatpush.msra.mxu0 0.0
      %451 = vmatpush.msra.mxu0 0.0
      %452 = vmatpush.msra.mxu0 0.0
      %453 = vmatpush.msra.mxu0 0.0
      %454 = vmatpush.msra.mxu0 0.0
      %455 = vmatpush.msra.mxu0 0.0
      %456 = vmatpush.msra.mxu0 0.0
      %457 = vmatpush.msra.mxu0 0.0
      %458 = vmatpush.msra.mxu0 0.0
      %459 = vmatpush.msra.mxu0 %v341
      %460 = vmatpush.msra.mxu0 %v338
      %461 = vmatpush.msra.mxu0 %v335
      %462 = vmatmul.f32.gmra.mxu0 %v344
      %v463 = vpop.f32.mrf.mxu0
      %v464 = vadd.f32 0.0, %v463
      %465 = vdwg.mxu0
      %s466 = smul.u32 %s21, 4
      %s467 = sadd.s32 %s466, 1
      %s468 = smul.u32 %s467, 4
      %s469 = sld [smem:[#allocation3 + %s468]]
      %s470 = sadd.s32 %s468, 1
      %s471 = sld [smem:[#allocation3 + %s470]]
      %s472 = sadd.s32 %s468, 2
      %s473 = sld [smem:[#allocation3 + %s472]]
      %s474 = sadd.s32 %s468, 3
      %s475 = sld [smem:[#allocation3 + %s474]]
      %s476 = scvt.s32.f32 %s475
      %v477 = vstv %s476
      %v478 = vmul.f32 %v137, %v477
      %v479 = vmul.f32 %v478, %v147
      %v480 = vadd.f32 %v479, 0.001
      %v481 = vfloor.f32 %v480
      %v482 = vmul.f32 %v151, %v477
      %v483 = vmul.f32 %v482, %v147
      %v484 = vsub.f32 %v483, 0.001
      %v485 = vceil.f32 %v484
      %s486 = scvt.s32.f32 %s471
      %v487 = vstv %s486
      %v488 = vsub.f32 %v134, %v487
      %vm489 = vcmp.ge.f32.partialorder %v488, %v481
      %vm490 = vcmp.lt.f32.partialorder %v488, %v485
      %vm491 = vmand %vm489, %vm490
      %v492 = vsub.f32 %v485, %v481
      %v493 = vmax.f32 %v492, 1.0
      %v494 = vrcp.pop %v493
      %v495 = vmul.f32 %v493, %v494
      %v496 = vsub.f32 1.0, %v495
      %v497 = vmul.f32 %v494, %v496
      %v498 = vadd.f32 %v494, %v497
      %vm499 = vweird.f32 %v493
      %vm500 = vweird.f32 %v494
      %vm501 = vmor %vm499, %vm500
      %v502 = vsel %vm501, %v494, %v498
      %v503 = vand.u32 2147483647, %v493
      %vm504 = vcmp.eq.f32.partialorder %v503, 8.507059e+37
      %v505 = vand.u32 %v493, 2147483648
      %v506 = vor.u32 1.1754944e-38, %v505
      %v507 = vsel %vm504, %v506, %v502
      %v508 = vmul.f32 1.0, %v507
      %v509 = vsel %vm491, %v508, 0.0
      %s510 = scvt.s32.f32 %s473
      %v511 = vstv %s510
      %v512 = vmul.f32 %v137, %v511
      %v513 = vmul.f32 %v512, %v147
      %v514 = vadd.f32 %v513, 0.001
      %v515 = vfloor.f32 %v514
      %v516 = vmul.f32 %v151, %v511
      %v517 = vmul.f32 %v516, %v147
      %v518 = vsub.f32 %v517, 0.001
      %v519 = vceil.f32 %v518
      %s520 = scvt.s32.f32 %s469
      %v521 = vstv %s520
      %v522 = vsub.f32 %v134, %v521
      %vm523 = vcmp.ge.f32.partialorder %v522, %v515
      %vm524 = vcmp.lt.f32.partialorder %v522, %v519
      %vm525 = vmand %vm523, %vm524
      %v526 = vsub.f32 %v519, %v515
      %v527 = vmax.f32 %v526, 1.0
      %v528 = vrcp.pop %v527
      %v529 = vmul.f32 %v527, %v528
      %v530 = vsub.f32 1.0, %v529
      %v531 = vmul.f32 %v528, %v530
      %v532 = vadd.f32 %v528, %v531
      %vm533 = vweird.f32 %v527
      %vm534 = vweird.f32 %v528
      %vm535 = vmor %vm533, %vm534
      %v536 = vsel %vm535, %v528, %v532
      %v537 = vand.u32 2147483647, %v527
      %vm538 = vcmp.eq.f32.partialorder %v537, 8.507059e+37
      %v539 = vand.u32 %v527, 2147483648
      %v540 = vor.u32 1.1754944e-38, %v539
      %v541 = vsel %vm538, %v540, %v536
      %v542 = vmul.f32 1.0, %v541
      %v543 = vsel %vm525, %v542, 0.0
      %v545 = vsel %vm214, %v509, 0
      %547 = vmatpush.xpose.msra.mxu0 0.0
      %548 = vmatpush.xpose.msra.mxu0 0.0
      %549 = vmatpush.xpose.msra.mxu0 0.0
      %550 = vmatpush.xpose.msra.mxu0 0.0
      %551 = vmatpush.xpose.msra.mxu0 0.0
      %552 = vmatpush.xpose.msra.mxu0 0.0
      %553 = vmatpush.xpose.msra.mxu0 0.0
      %554 = vmatpush.xpose.msra.mxu0 0.0
      %555 = vmatpush.xpose.msra.mxu0 0.0
      %556 = vmatpush.xpose.msra.mxu0 0.0
      %557 = vmatpush.xpose.msra.mxu0 0.0
      %558 = vmatpush.xpose.msra.mxu0 0.0
      %559 = vmatpush.xpose.msra.mxu0 0.0
      %560 = vmatpush.xpose.msra.mxu0 0.0
      %561 = vmatpush.xpose.msra.mxu0 0.0
      %562 = vmatpush.xpose.msra.mxu0 %v545
      %563 = vmatmul.f32.gmra.mxu0 %v216
      %v564 = vpop.f32.mrf.mxu0
      %v565 = vadd.f32 0.0, %v564
      %566 = vmatmul.f32.gmra.mxu0 %v219
      %v567 = vpop.f32.mrf.mxu0
      %v568 = vadd.f32 0.0, %v567
      %569 = vmatmul.f32.gmra.mxu0 %v222
      %v570 = vpop.f32.mrf.mxu0
      %v571 = vadd.f32 0.0, %v570
      %572 = vmatmul.f32.gmra.mxu0 %v225
      %v573 = vpop.f32.mrf.mxu0
      %v574 = vadd.f32 0.0, %v573
      %575 = vmatmul.f32.gmra.mxu0 %v228
      %v576 = vpop.f32.mrf.mxu0
      %v577 = vadd.f32 0.0, %v576
      %578 = vmatmul.f32.gmra.mxu0 %v231
      %v579 = vpop.f32.mrf.mxu0
      %v580 = vadd.f32 0.0, %v579
      %581 = vmatmul.f32.gmra.mxu0 %v234
      %v582 = vpop.f32.mrf.mxu0
      %v583 = vadd.f32 0.0, %v582
      %584 = vmatmul.f32.gmra.mxu0 %v237
      %v585 = vpop.f32.mrf.mxu0
      %v586 = vadd.f32 0.0, %v585
      %587 = vmatmul.f32.gmra.mxu0 %v240
      %v588 = vpop.f32.mrf.mxu0
      %v589 = vadd.f32 0.0, %v588
      %590 = vmatmul.f32.gmra.mxu0 %v243
      %v591 = vpop.f32.mrf.mxu0
      %v592 = vadd.f32 0.0, %v591
      %593 = vmatmul.f32.gmra.mxu0 %v246
      %v594 = vpop.f32.mrf.mxu0
      %v595 = vadd.f32 0.0, %v594
      %596 = vmatmul.f32.gmra.mxu0 %v249
      %v597 = vpop.f32.mrf.mxu0
      %v598 = vadd.f32 0.0, %v597
      %599 = vmatmul.f32.gmra.mxu0 %v252
      %v600 = vpop.f32.mrf.mxu0
      %v601 = vadd.f32 0.0, %v600
      %602 = vmatmul.f32.gmra.mxu0 %v255
      %v603 = vpop.f32.mrf.mxu0
      %v604 = vadd.f32 0.0, %v603
      %605 = vmatmul.f32.gmra.mxu0 %v258
      %v606 = vpop.f32.mrf.mxu0
      %v607 = vadd.f32 0.0, %v606
      %608 = vmatmul.f32.gmra.mxu0 %v261
      %v609 = vpop.f32.mrf.mxu0
      %v610 = vadd.f32 0.0, %v609
      %611 = vmatmul.f32.gmra.mxu0 %v264
      %v612 = vpop.f32.mrf.mxu0
      %v613 = vadd.f32 0.0, %v612
      %614 = vmatmul.f32.gmra.mxu0 %v267
      %v615 = vpop.f32.mrf.mxu0
      %v616 = vadd.f32 0.0, %v615
      %617 = vdwg.mxu0
      %v619 = vsel %vm214, %v543, 0
      %621 = vmatpush.msra.mxu0 0.0
      %622 = vmatpush.msra.mxu0 0.0
      %623 = vmatpush.msra.mxu0 0.0
      %624 = vmatpush.msra.mxu0 0.0
      %625 = vmatpush.msra.mxu0 0.0
      %626 = vmatpush.msra.mxu0 0.0
      %627 = vmatpush.msra.mxu0 0.0
      %628 = vmatpush.msra.mxu0 0.0
      %629 = vmatpush.msra.mxu0 0.0
      %630 = vmatpush.msra.mxu0 0.0
      %631 = vmatpush.msra.mxu0 0.0
      %632 = vmatpush.msra.mxu0 0.0
      %633 = vmatpush.msra.mxu0 0.0
      %634 = vmatpush.msra.mxu0 %v571
      %635 = vmatpush.msra.mxu0 %v568
      %636 = vmatpush.msra.mxu0 %v565
      %637 = vmatmul.f32.gmra.mxu0 %v619
      %v638 = vpop.f32.mrf.mxu0
      %v639 = vadd.f32 0.0, %v638
      %640 = vdwg.mxu0
      %641 = vmatpush.msra.mxu0 0.0
      %642 = vmatpush.msra.mxu0 0.0
      %643 = vmatpush.msra.mxu0 0.0
      %644 = vmatpush.msra.mxu0 0.0
      %645 = vmatpush.msra.mxu0 0.0
      %646 = vmatpush.msra.mxu0 0.0
      %647 = vmatpush.msra.mxu0 0.0
      %648 = vmatpush.msra.mxu0 0.0
      %649 = vmatpush.msra.mxu0 0.0
      %650 = vmatpush.msra.mxu0 0.0
      %651 = vmatpush.msra.mxu0 0.0
      %652 = vmatpush.msra.mxu0 0.0
      %653 = vmatpush.msra.mxu0 0.0
      %654 = vmatpush.msra.mxu0 %v580
      %655 = vmatpush.msra.mxu0 %v577
      %656 = vmatpush.msra.mxu0 %v574
      %657 = vmatmul.f32.gmra.mxu0 %v619
      %v658 = vpop.f32.mrf.mxu0
      %v659 = vadd.f32 0.0, %v658
      %660 = vdwg.mxu0
      %661 = vmatpush.msra.mxu0 0.0
      %662 = vmatpush.msra.mxu0 0.0
      %663 = vmatpush.msra.mxu0 0.0
      %664 = vmatpush.msra.mxu0 0.0
      %665 = vmatpush.msra.mxu0 0.0
      %666 = vmatpush.msra.mxu0 0.0
      %667 = vmatpush.msra.mxu0 0.0
      %668 = vmatpush.msra.mxu0 0.0
      %669 = vmatpush.msra.mxu0 0.0
      %670 = vmatpush.msra.mxu0 0.0
      %671 = vmatpush.msra.mxu0 0.0
      %672 = vmatpush.msra.mxu0 0.0
      %673 = vmatpush.msra.mxu0 0.0
      %674 = vmatpush.msra.mxu0 %v589
      %675 = vmatpush.msra.mxu0 %v586
      %676 = vmatpush.msra.mxu0 %v583
      %677 = vmatmul.f32.gmra.mxu0 %v619
      %v678 = vpop.f32.mrf.mxu0
      %v679 = vadd.f32 0.0, %v678
      %680 = vdwg.mxu0
      %681 = vmatpush.msra.mxu0 0.0
      %682 = vmatpush.msra.mxu0 0.0
      %683 = vmatpush.msra.mxu0 0.0
      %684 = vmatpush.msra.mxu0 0.0
      %685 = vmatpush.msra.mxu0 0.0
      %686 = vmatpush.msra.mxu0 0.0
      %687 = vmatpush.msra.mxu0 0.0
      %688 = vmatpush.msra.mxu0 0.0
      %689 = vmatpush.msra.mxu0 0.0
      %690 = vmatpush.msra.mxu0 0.0
      %691 = vmatpush.msra.mxu0 0.0
      %692 = vmatpush.msra.mxu0 0.0
      %693 = vmatpush.msra.mxu0 0.0
      %694 = vmatpush.msra.mxu0 %v598
      %695 = vmatpush.msra.mxu0 %v595
      %696 = vmatpush.msra.mxu0 %v592
      %697 = vmatmul.f32.gmra.mxu0 %v619
      %v698 = vpop.f32.mrf.mxu0
      %v699 = vadd.f32 0.0, %v698
      %700 = vdwg.mxu0
      %701 = vmatpush.msra.mxu0 0.0
      %702 = vmatpush.msra.mxu0 0.0
      %703 = vmatpush.msra.mxu0 0.0
      %704 = vmatpush.msra.mxu0 0.0
      %705 = vmatpush.msra.mxu0 0.0
      %706 = vmatpush.msra.mxu0 0.0
      %707 = vmatpush.msra.mxu0 0.0
      %708 = vmatpush.msra.mxu0 0.0
      %709 = vmatpush.msra.mxu0 0.0
      %710 = vmatpush.msra.mxu0 0.0
      %711 = vmatpush.msra.mxu0 0.0
      %712 = vmatpush.msra.mxu0 0.0
      %713 = vmatpush.msra.mxu0 0.0
      %714 = vmatpush.msra.mxu0 %v607
      %715 = vmatpush.msra.mxu0 %v604
      %716 = vmatpush.msra.mxu0 %v601
      %717 = vmatmul.f32.gmra.mxu0 %v619
      %v718 = vpop.f32.mrf.mxu0
      %v719 = vadd.f32 0.0, %v718
      %720 = vdwg.mxu0
      %721 = vmatpush.msra.mxu0 0.0
      %722 = vmatpush.msra.mxu0 0.0
      %723 = vmatpush.msra.mxu0 0.0
      %724 = vmatpush.msra.mxu0 0.0
      %725 = vmatpush.msra.mxu0 0.0
      %726 = vmatpush.msra.mxu0 0.0
      %727 = vmatpush.msra.mxu0 0.0
      %728 = vmatpush.msra.mxu0 0.0
      %729 = vmatpush.msra.mxu0 0.0
      %730 = vmatpush.msra.mxu0 0.0
      %731 = vmatpush.msra.mxu0 0.0
      %732 = vmatpush.msra.mxu0 0.0
      %733 = vmatpush.msra.mxu0 0.0
      %734 = vmatpush.msra.mxu0 %v616
      %735 = vmatpush.msra.mxu0 %v613
      %736 = vmatpush.msra.mxu0 %v610
      %737 = vmatmul.f32.gmra.mxu0 %v619
      %v738 = vpop.f32.mrf.mxu0
      %v739 = vadd.f32 0.0, %v738
      %740 = vdwg.mxu0
      %s741 = sadd.s32 %s466, 2
      %s742 = smul.u32 %s741, 4
      %s743 = sld [smem:[#allocation3 + %s742]]
      %s744 = sadd.s32 %s742, 1
      %s745 = sld [smem:[#allocation3 + %s744]]
      %s746 = sadd.s32 %s742, 2
      %s747 = sld [smem:[#allocation3 + %s746]]
      %s748 = sadd.s32 %s742, 3
      %s749 = sld [smem:[#allocation3 + %s748]]
      %s750 = scvt.s32.f32 %s749
      %v751 = vstv %s750
      %v752 = vmul.f32 %v137, %v751
      %v753 = vmul.f32 %v752, %v147
      %v754 = vadd.f32 %v753, 0.001
      %v755 = vfloor.f32 %v754
      %v756 = vmul.f32 %v151, %v751
      %v757 = vmul.f32 %v756, %v147
      %v758 = vsub.f32 %v757, 0.001
      %v759 = vceil.f32 %v758
      %s760 = scvt.s32.f32 %s745
      %v761 = vstv %s760
      %v762 = vsub.f32 %v134, %v761
      %vm763 = vcmp.ge.f32.partialorder %v762, %v755
      %vm764 = vcmp.lt.f32.partialorder %v762, %v759
      %vm765 = vmand %vm763, %vm764
      %v766 = vsub.f32 %v759, %v755
      %v767 = vmax.f32 %v766, 1.0
      %v768 = vrcp.pop %v767
      %v769 = vmul.f32 %v767, %v768
      %v770 = vsub.f32 1.0, %v769
      %v771 = vmul.f32 %v768, %v770
      %v772 = vadd.f32 %v768, %v771
      %vm773 = vweird.f32 %v767
      %vm774 = vweird.f32 %v768
      %vm775 = vmor %vm773, %vm774
      %v776 = vsel %vm775, %v768, %v772
      %v777 = vand.u32 2147483647, %v767
      %vm778 = vcmp.eq.f32.partialorder %v777, 8.507059e+37
      %v779 = vand.u32 %v767, 2147483648
      %v780 = vor.u32 1.1754944e-38, %v779
      %v781 = vsel %vm778, %v780, %v776
      %v782 = vmul.f32 1.0, %v781
      %v783 = vsel %vm765, %v782, 0.0
      %s784 = scvt.s32.f32 %s747
      %v785 = vstv %s784
      %v786 = vmul.f32 %v137, %v785
      %v787 = vmul.f32 %v786, %v147
      %v788 = vadd.f32 %v787, 0.001
      %v789 = vfloor.f32 %v788
      %v790 = vmul.f32 %v151, %v785
      %v791 = vmul.f32 %v790, %v147
      %v792 = vsub.f32 %v791, 0.001
      %v793 = vceil.f32 %v792
      %s794 = scvt.s32.f32 %s743
      %v795 = vstv %s794
      %v796 = vsub.f32 %v134, %v795
      %vm797 = vcmp.ge.f32.partialorder %v796, %v789
      %vm798 = vcmp.lt.f32.partialorder %v796, %v793
      %vm799 = vmand %vm797, %vm798
      %v800 = vsub.f32 %v793, %v789
      %v801 = vmax.f32 %v800, 1.0
      %v802 = vrcp.pop %v801
      %v803 = vmul.f32 %v801, %v802
      %v804 = vsub.f32 1.0, %v803
      %v805 = vmul.f32 %v802, %v804
      %v806 = vadd.f32 %v802, %v805
      %vm807 = vweird.f32 %v801
      %vm808 = vweird.f32 %v802
      %vm809 = vmor %vm807, %vm808
      %v810 = vsel %vm809, %v802, %v806
      %v811 = vand.u32 2147483647, %v801
      %vm812 = vcmp.eq.f32.partialorder %v811, 8.507059e+37
      %v813 = vand.u32 %v801, 2147483648
      %v814 = vor.u32 1.1754944e-38, %v813
      %v815 = vsel %vm812, %v814, %v810
      %v816 = vmul.f32 1.0, %v815
      %v817 = vsel %vm799, %v816, 0.0
      %v819 = vsel %vm214, %v783, 0
      %821 = vmatpush.xpose.msra.mxu0 0.0
      %822 = vmatpush.xpose.msra.mxu0 0.0
      %823 = vmatpush.xpose.msra.mxu0 0.0
      %824 = vmatpush.xpose.msra.mxu0 0.0
      %825 = vmatpush.xpose.msra.mxu0 0.0
      %826 = vmatpush.xpose.msra.mxu0 0.0
      %827 = vmatpush.xpose.msra.mxu0 0.0
      %828 = vmatpush.xpose.msra.mxu0 0.0
      %829 = vmatpush.xpose.msra.mxu0 0.0
      %830 = vmatpush.xpose.msra.mxu0 0.0
      %831 = vmatpush.xpose.msra.mxu0 0.0
      %832 = vmatpush.xpose.msra.mxu0 0.0
      %833 = vmatpush.xpose.msra.mxu0 0.0
      %834 = vmatpush.xpose.msra.mxu0 0.0
      %835 = vmatpush.xpose.msra.mxu0 0.0
      %836 = vmatpush.xpose.msra.mxu0 %v819
      %837 = vmatmul.f32.gmra.mxu0 %v216
      %v838 = vpop.f32.mrf.mxu0
      %v839 = vadd.f32 0.0, %v838
      %840 = vmatmul.f32.gmra.mxu0 %v219
      %v841 = vpop.f32.mrf.mxu0
      %v842 = vadd.f32 0.0, %v841
      %843 = vmatmul.f32.gmra.mxu0 %v222
      %v844 = vpop.f32.mrf.mxu0
      %v845 = vadd.f32 0.0, %v844
      %846 = vmatmul.f32.gmra.mxu0 %v225
      %v847 = vpop.f32.mrf.mxu0
      %v848 = vadd.f32 0.0, %v847
      %849 = vmatmul.f32.gmra.mxu0 %v228
      %v850 = vpop.f32.mrf.mxu0
      %v851 = vadd.f32 0.0, %v850
      %852 = vmatmul.f32.gmra.mxu0 %v231
      %v853 = vpop.f32.mrf.mxu0
      %v854 = vadd.f32 0.0, %v853
      %855 = vmatmul.f32.gmra.mxu0 %v234
      %v856 = vpop.f32.mrf.mxu0
      %v857 = vadd.f32 0.0, %v856
      %858 = vmatmul.f32.gmra.mxu0 %v237
      %v859 = vpop.f32.mrf.mxu0
      %v860 = vadd.f32 0.0, %v859
      %861 = vmatmul.f32.gmra.mxu0 %v240
      %v862 = vpop.f32.mrf.mxu0
      %v863 = vadd.f32 0.0, %v862
      %864 = vmatmul.f32.gmra.mxu0 %v243
      %v865 = vpop.f32.mrf.mxu0
      %v866 = vadd.f32 0.0, %v865
      %867 = vmatmul.f32.gmra.mxu0 %v246
      %v868 = vpop.f32.mrf.mxu0
      %v869 = vadd.f32 0.0, %v868
      %870 = vmatmul.f32.gmra.mxu0 %v249
      %v871 = vpop.f32.mrf.mxu0
      %v872 = vadd.f32 0.0, %v871
      %873 = vmatmul.f32.gmra.mxu0 %v252
      %v874 = vpop.f32.mrf.mxu0
      %v875 = vadd.f32 0.0, %v874
      %876 = vmatmul.f32.gmra.mxu0 %v255
      %v877 = vpop.f32.mrf.mxu0
      %v878 = vadd.f32 0.0, %v877
      %879 = vmatmul.f32.gmra.mxu0 %v258
      %v880 = vpop.f32.mrf.mxu0
      %v881 = vadd.f32 0.0, %v880
      %882 = vmatmul.f32.gmra.mxu0 %v261
      %v883 = vpop.f32.mrf.mxu0
      %v884 = vadd.f32 0.0, %v883
      %885 = vmatmul.f32.gmra.mxu0 %v264
      %v886 = vpop.f32.mrf.mxu0
      %v887 = vadd.f32 0.0, %v886
      %888 = vmatmul.f32.gmra.mxu0 %v267
      %v889 = vpop.f32.mrf.mxu0
      %v890 = vadd.f32 0.0, %v889
      %891 = vdwg.mxu0
      %v893 = vsel %vm214, %v817, 0
      %895 = vmatpush.msra.mxu0 0.0
      %896 = vmatpush.msra.mxu0 0.0
      %897 = vmatpush.msra.mxu0 0.0
      %898 = vmatpush.msra.mxu0 0.0
      %899 = vmatpush.msra.mxu0 0.0
      %900 = vmatpush.msra.mxu0 0.0
      %901 = vmatpush.msra.mxu0 0.0
      %902 = vmatpush.msra.mxu0 0.0
      %903 = vmatpush.msra.mxu0 0.0
      %904 = vmatpush.msra.mxu0 0.0
      %905 = vmatpush.msra.mxu0 0.0
      %906 = vmatpush.msra.mxu0 0.0
      %907 = vmatpush.msra.mxu0 0.0
      %908 = vmatpush.msra.mxu0 %v845
      %909 = vmatpush.msra.mxu0 %v842
      %910 = vmatpush.msra.mxu0 %v839
      %911 = vmatmul.f32.gmra.mxu0 %v893
      %v912 = vpop.f32.mrf.mxu0
      %v913 = vadd.f32 0.0, %v912
      %914 = vdwg.mxu0
      %915 = vmatpush.msra.mxu0 0.0
      %916 = vmatpush.msra.mxu0 0.0
      %917 = vmatpush.msra.mxu0 0.0
      %918 = vmatpush.msra.mxu0 0.0
      %919 = vmatpush.msra.mxu0 0.0
      %920 = vmatpush.msra.mxu0 0.0
      %921 = vmatpush.msra.mxu0 0.0
      %922 = vmatpush.msra.mxu0 0.0
      %923 = vmatpush.msra.mxu0 0.0
      %924 = vmatpush.msra.mxu0 0.0
      %925 = vmatpush.msra.mxu0 0.0
      %926 = vmatpush.msra.mxu0 0.0
      %927 = vmatpush.msra.mxu0 0.0
      %928 = vmatpush.msra.mxu0 %v854
      %929 = vmatpush.msra.mxu0 %v851
      %930 = vmatpush.msra.mxu0 %v848
      %931 = vmatmul.f32.gmra.mxu0 %v893
      %v932 = vpop.f32.mrf.mxu0
      %v933 = vadd.f32 0.0, %v932
      %934 = vdwg.mxu0
      %935 = vmatpush.msra.mxu0 0.0
      %936 = vmatpush.msra.mxu0 0.0
      %937 = vmatpush.msra.mxu0 0.0
      %938 = vmatpush.msra.mxu0 0.0
      %939 = vmatpush.msra.mxu0 0.0
      %940 = vmatpush.msra.mxu0 0.0
      %941 = vmatpush.msra.mxu0 0.0
      %942 = vmatpush.msra.mxu0 0.0
      %943 = vmatpush.msra.mxu0 0.0
      %944 = vmatpush.msra.mxu0 0.0
      %945 = vmatpush.msra.mxu0 0.0
      %946 = vmatpush.msra.mxu0 0.0
      %947 = vmatpush.msra.mxu0 0.0
      %948 = vmatpush.msra.mxu0 %v863
      %949 = vmatpush.msra.mxu0 %v860
      %950 = vmatpush.msra.mxu0 %v857
      %951 = vmatmul.f32.gmra.mxu0 %v893
      %v952 = vpop.f32.mrf.mxu0
      %v953 = vadd.f32 0.0, %v952
      %954 = vdwg.mxu0
      %955 = vmatpush.msra.mxu0 0.0
      %956 = vmatpush.msra.mxu0 0.0
      %957 = vmatpush.msra.mxu0 0.0
      %958 = vmatpush.msra.mxu0 0.0
      %959 = vmatpush.msra.mxu0 0.0
      %960 = vmatpush.msra.mxu0 0.0
      %961 = vmatpush.msra.mxu0 0.0
      %962 = vmatpush.msra.mxu0 0.0
      %963 = vmatpush.msra.mxu0 0.0
      %964 = vmatpush.msra.mxu0 0.0
      %965 = vmatpush.msra.mxu0 0.0
      %966 = vmatpush.msra.mxu0 0.0
      %967 = vmatpush.msra.mxu0 0.0
      %968 = vmatpush.msra.mxu0 %v872
      %969 = vmatpush.msra.mxu0 %v869
      %970 = vmatpush.msra.mxu0 %v866
      %971 = vmatmul.f32.gmra.mxu0 %v893
      %v972 = vpop.f32.mrf.mxu0
      %v973 = vadd.f32 0.0, %v972
      %974 = vdwg.mxu0
      %975 = vmatpush.msra.mxu0 0.0
      %976 = vmatpush.msra.mxu0 0.0
      %977 = vmatpush.msra.mxu0 0.0
      %978 = vmatpush.msra.mxu0 0.0
      %979 = vmatpush.msra.mxu0 0.0
      %980 = vmatpush.msra.mxu0 0.0
      %981 = vmatpush.msra.mxu0 0.0
      %982 = vmatpush.msra.mxu0 0.0
      %983 = vmatpush.msra.mxu0 0.0
      %984 = vmatpush.msra.mxu0 0.0
      %985 = vmatpush.msra.mxu0 0.0
      %986 = vmatpush.msra.mxu0 0.0
      %987 = vmatpush.msra.mxu0 0.0
      %988 = vmatpush.msra.mxu0 %v881
      %989 = vmatpush.msra.mxu0 %v878
      %990 = vmatpush.msra.mxu0 %v875
      %991 = vmatmul.f32.gmra.mxu0 %v893
      %v992 = vpop.f32.mrf.mxu0
      %v993 = vadd.f32 0.0, %v992
      %994 = vdwg.mxu0
      %995 = vmatpush.msra.mxu0 0.0
      %996 = vmatpush.msra.mxu0 0.0
      %997 = vmatpush.msra.mxu0 0.0
      %998 = vmatpush.msra.mxu0 0.0
      %999 = vmatpush.msra.mxu0 0.0
      %1000 = vmatpush.msra.mxu0 0.0
      %1001 = vmatpush.msra.mxu0 0.0
      %1002 = vmatpush.msra.mxu0 0.0
      %1003 = vmatpush.msra.mxu0 0.0
      %1004 = vmatpush.msra.mxu0 0.0
      %1005 = vmatpush.msra.mxu0 0.0
      %1006 = vmatpush.msra.mxu0 0.0
      %1007 = vmatpush.msra.mxu0 0.0
      %1008 = vmatpush.msra.mxu0 %v890
      %1009 = vmatpush.msra.mxu0 %v887
      %1010 = vmatpush.msra.mxu0 %v884
      %1011 = vmatmul.f32.gmra.mxu0 %v893
      %v1012 = vpop.f32.mrf.mxu0
      %v1013 = vadd.f32 0.0, %v1012
      %1014 = vdwg.mxu0
      %s1015 = sadd.s32 %s466, 3
      %s1016 = smul.u32 %s1015, 4
      %s1017 = sld [smem:[#allocation3 + %s1016]]
      %s1018 = sadd.s32 %s1016, 1
      %s1019 = sld [smem:[#allocation3 + %s1018]]
      %s1020 = sadd.s32 %s1016, 2
      %s1021 = sld [smem:[#allocation3 + %s1020]]
      %s1022 = sadd.s32 %s1016, 3
      %s1023 = sld [smem:[#allocation3 + %s1022]]
      %s1024 = scvt.s32.f32 %s1023
      %v1025 = vstv %s1024
      %v1026 = vmul.f32 %v137, %v1025
      %v1027 = vmul.f32 %v1026, %v147
      %v1028 = vadd.f32 %v1027, 0.001
      %v1029 = vfloor.f32 %v1028
      %v1030 = vmul.f32 %v151, %v1025
      %v1031 = vmul.f32 %v1030, %v147
      %v1032 = vsub.f32 %v1031, 0.001
      %v1033 = vceil.f32 %v1032
      %s1034 = scvt.s32.f32 %s1019
      %v1035 = vstv %s1034
      %v1036 = vsub.f32 %v134, %v1035
      %vm1037 = vcmp.ge.f32.partialorder %v1036, %v1029
      %vm1038 = vcmp.lt.f32.partialorder %v1036, %v1033
      %vm1039 = vmand %vm1037, %vm1038
      %v1040 = vsub.f32 %v1033, %v1029
      %v1041 = vmax.f32 %v1040, 1.0
      %v1042 = vrcp.pop %v1041
      %v1043 = vmul.f32 %v1041, %v1042
      %v1044 = vsub.f32 1.0, %v1043
      %v1045 = vmul.f32 %v1042, %v1044
      %v1046 = vadd.f32 %v1042, %v1045
      %vm1047 = vweird.f32 %v1041
      %vm1048 = vweird.f32 %v1042
      %vm1049 = vmor %vm1047, %vm1048
      %v1050 = vsel %vm1049, %v1042, %v1046
      %v1051 = vand.u32 2147483647, %v1041
      %vm1052 = vcmp.eq.f32.partialorder %v1051, 8.507059e+37
      %v1053 = vand.u32 %v1041, 2147483648
      %v1054 = vor.u32 1.1754944e-38, %v1053
      %v1055 = vsel %vm1052, %v1054, %v1050
      %v1056 = vmul.f32 1.0, %v1055
      %v1057 = vsel %vm1039, %v1056, 0.0
      %s1058 = scvt.s32.f32 %s1021
      %v1059 = vstv %s1058
      %v1060 = vmul.f32 %v137, %v1059
      %v1061 = vmul.f32 %v1060, %v147
      %v1062 = vadd.f32 %v1061, 0.001
      %v1063 = vfloor.f32 %v1062
      %v1064 = vmul.f32 %v151, %v1059
      %v1065 = vmul.f32 %v1064, %v147
      %v1066 = vsub.f32 %v1065, 0.001
      %v1067 = vceil.f32 %v1066
      %s1068 = scvt.s32.f32 %s1017
      %v1069 = vstv %s1068
      %v1070 = vsub.f32 %v134, %v1069
      %vm1071 = vcmp.ge.f32.partialorder %v1070, %v1063
      %vm1072 = vcmp.lt.f32.partialorder %v1070, %v1067
      %vm1073 = vmand %vm1071, %vm1072
      %v1074 = vsub.f32 %v1067, %v1063
      %v1075 = vmax.f32 %v1074, 1.0
      %v1076 = vrcp.pop %v1075
      %v1077 = vmul.f32 %v1075, %v1076
      %v1078 = vsub.f32 1.0, %v1077
      %v1079 = vmul.f32 %v1076, %v1078
      %v1080 = vadd.f32 %v1076, %v1079
      %vm1081 = vweird.f32 %v1075
      %vm1082 = vweird.f32 %v1076
      %vm1083 = vmor %vm1081, %vm1082
      %v1084 = vsel %vm1083, %v1076, %v1080
      %v1085 = vand.u32 2147483647, %v1075
      %vm1086 = vcmp.eq.f32.partialorder %v1085, 8.507059e+37
      %v1087 = vand.u32 %v1075, 2147483648
      %v1088 = vor.u32 1.1754944e-38, %v1087
      %v1089 = vsel %vm1086, %v1088, %v1084
      %v1090 = vmul.f32 1.0, %v1089
      %v1091 = vsel %vm1073, %v1090, 0.0
      %v1093 = vsel %vm214, %v1057, 0
      %1095 = vmatpush.xpose.msra.mxu0 0.0
      %1096 = vmatpush.xpose.msra.mxu0 0.0
      %1097 = vmatpush.xpose.msra.mxu0 0.0
      %1098 = vmatpush.xpose.msra.mxu0 0.0
      %1099 = vmatpush.xpose.msra.mxu0 0.0
      %1100 = vmatpush.xpose.msra.mxu0 0.0
      %1101 = vmatpush.xpose.msra.mxu0 0.0
      %1102 = vmatpush.xpose.msra.mxu0 0.0
      %1103 = vmatpush.xpose.msra.mxu0 0.0
      %1104 = vmatpush.xpose.msra.mxu0 0.0
      %1105 = vmatpush.xpose.msra.mxu0 0.0
      %1106 = vmatpush.xpose.msra.mxu0 0.0
      %1107 = vmatpush.xpose.msra.mxu0 0.0
      %1108 = vmatpush.xpose.msra.mxu0 0.0
      %1109 = vmatpush.xpose.msra.mxu0 0.0
      %1110 = vmatpush.xpose.msra.mxu0 %v1093
      %1111 = vmatmul.f32.gmra.mxu0 %v216
      %v1112 = vpop.f32.mrf.mxu0
      %v1113 = vadd.f32 0.0, %v1112
      %1114 = vmatmul.f32.gmra.mxu0 %v219
      %v1115 = vpop.f32.mrf.mxu0
      %v1116 = vadd.f32 0.0, %v1115
      %1117 = vmatmul.f32.gmra.mxu0 %v222
      %v1118 = vpop.f32.mrf.mxu0
      %v1119 = vadd.f32 0.0, %v1118
      %1120 = vmatmul.f32.gmra.mxu0 %v225
      %v1121 = vpop.f32.mrf.mxu0
      %v1122 = vadd.f32 0.0, %v1121
      %1123 = vmatmul.f32.gmra.mxu0 %v228
      %v1124 = vpop.f32.mrf.mxu0
      %v1125 = vadd.f32 0.0, %v1124
      %1126 = vmatmul.f32.gmra.mxu0 %v231
      %v1127 = vpop.f32.mrf.mxu0
      %v1128 = vadd.f32 0.0, %v1127
      %1129 = vmatmul.f32.gmra.mxu0 %v234
      %v1130 = vpop.f32.mrf.mxu0
      %v1131 = vadd.f32 0.0, %v1130
      %1132 = vmatmul.f32.gmra.mxu0 %v237
      %v1133 = vpop.f32.mrf.mxu0
      %v1134 = vadd.f32 0.0, %v1133
      %1135 = vmatmul.f32.gmra.mxu0 %v240
      %v1136 = vpop.f32.mrf.mxu0
      %v1137 = vadd.f32 0.0, %v1136
      %1138 = vmatmul.f32.gmra.mxu0 %v243
      %v1139 = vpop.f32.mrf.mxu0
      %v1140 = vadd.f32 0.0, %v1139
      %1141 = vmatmul.f32.gmra.mxu0 %v246
      %v1142 = vpop.f32.mrf.mxu0
      %v1143 = vadd.f32 0.0, %v1142
      %1144 = vmatmul.f32.gmra.mxu0 %v249
      %v1145 = vpop.f32.mrf.mxu0
      %v1146 = vadd.f32 0.0, %v1145
      %1147 = vmatmul.f32.gmra.mxu0 %v252
      %v1148 = vpop.f32.mrf.mxu0
      %v1149 = vadd.f32 0.0, %v1148
      %1150 = vmatmul.f32.gmra.mxu0 %v255
      %v1151 = vpop.f32.mrf.mxu0
      %v1152 = vadd.f32 0.0, %v1151
      %1153 = vmatmul.f32.gmra.mxu0 %v258
      %v1154 = vpop.f32.mrf.mxu0
      %v1155 = vadd.f32 0.0, %v1154
      %1156 = vmatmul.f32.gmra.mxu0 %v261
      %v1157 = vpop.f32.mrf.mxu0
      %v1158 = vadd.f32 0.0, %v1157
      %1159 = vmatmul.f32.gmra.mxu0 %v264
      %v1160 = vpop.f32.mrf.mxu0
      %v1161 = vadd.f32 0.0, %v1160
      %1162 = vmatmul.f32.gmra.mxu0 %v267
      %v1163 = vpop.f32.mrf.mxu0
      %v1164 = vadd.f32 0.0, %v1163
      %1165 = vdwg.mxu0
      %v1167 = vsel %vm214, %v1091, 0
      %1169 = vmatpush.msra.mxu0 0.0
      %1170 = vmatpush.msra.mxu0 0.0
      %1171 = vmatpush.msra.mxu0 0.0
      %1172 = vmatpush.msra.mxu0 0.0
      %1173 = vmatpush.msra.mxu0 0.0
      %1174 = vmatpush.msra.mxu0 0.0
      %1175 = vmatpush.msra.mxu0 0.0
      %1176 = vmatpush.msra.mxu0 0.0
      %1177 = vmatpush.msra.mxu0 0.0
      %1178 = vmatpush.msra.mxu0 0.0
      %1179 = vmatpush.msra.mxu0 0.0
      %1180 = vmatpush.msra.mxu0 0.0
      %1181 = vmatpush.msra.mxu0 0.0
      %1182 = vmatpush.msra.mxu0 %v1119
      %1183 = vmatpush.msra.mxu0 %v1116
      %1184 = vmatpush.msra.mxu0 %v1113
      %1185 = vmatmul.f32.gmra.mxu0 %v1167
      %v1186 = vpop.f32.mrf.mxu0
      %v1187 = vadd.f32 0.0, %v1186
      %1188 = vdwg.mxu0
      %1189 = vmatpush.msra.mxu0 0.0
      %1190 = vmatpush.msra.mxu0 0.0
      %1191 = vmatpush.msra.mxu0 0.0
      %1192 = vmatpush.msra.mxu0 0.0
      %1193 = vmatpush.msra.mxu0 0.0
      %1194 = vmatpush.msra.mxu0 0.0
      %1195 = vmatpush.msra.mxu0 0.0
      %1196 = vmatpush.msra.mxu0 0.0
      %1197 = vmatpush.msra.mxu0 0.0
      %1198 = vmatpush.msra.mxu0 0.0
      %1199 = vmatpush.msra.mxu0 0.0
      %1200 = vmatpush.msra.mxu0 0.0
      %1201 = vmatpush.msra.mxu0 0.0
      %1202 = vmatpush.msra.mxu0 %v1128
      %1203 = vmatpush.msra.mxu0 %v1125
      %1204 = vmatpush.msra.mxu0 %v1122
      %1205 = vmatmul.f32.gmra.mxu0 %v1167
      %v1206 = vpop.f32.mrf.mxu0
      %v1207 = vadd.f32 0.0, %v1206
      %1208 = vdwg.mxu0
      %1209 = vmatpush.msra.mxu0 0.0
      %1210 = vmatpush.msra.mxu0 0.0
      %1211 = vmatpush.msra.mxu0 0.0
      %1212 = vmatpush.msra.mxu0 0.0
      %1213 = vmatpush.msra.mxu0 0.0
      %1214 = vmatpush.msra.mxu0 0.0
      %1215 = vmatpush.msra.mxu0 0.0
      %1216 = vmatpush.msra.mxu0 0.0
      %1217 = vmatpush.msra.mxu0 0.0
      %1218 = vmatpush.msra.mxu0 0.0
      %1219 = vmatpush.msra.mxu0 0.0
      %1220 = vmatpush.msra.mxu0 0.0
      %1221 = vmatpush.msra.mxu0 0.0
      %1222 = vmatpush.msra.mxu0 %v1137
      %1223 = vmatpush.msra.mxu0 %v1134
      %1224 = vmatpush.msra.mxu0 %v1131
      %1225 = vmatmul.f32.gmra.mxu0 %v1167
      %v1226 = vpop.f32.mrf.mxu0
      %v1227 = vadd.f32 0.0, %v1226
      %1228 = vdwg.mxu0
      %1229 = vmatpush.msra.mxu0 0.0
      %1230 = vmatpush.msra.mxu0 0.0
      %1231 = vmatpush.msra.mxu0 0.0
      %1232 = vmatpush.msra.mxu0 0.0
      %1233 = vmatpush.msra.mxu0 0.0
      %1234 = vmatpush.msra.mxu0 0.0
      %1235 = vmatpush.msra.mxu0 0.0
      %1236 = vmatpush.msra.mxu0 0.0
      %1237 = vmatpush.msra.mxu0 0.0
      %1238 = vmatpush.msra.mxu0 0.0
      %1239 = vmatpush.msra.mxu0 0.0
      %1240 = vmatpush.msra.mxu0 0.0
      %1241 = vmatpush.msra.mxu0 0.0
      %1242 = vmatpush.msra.mxu0 %v1146
      %1243 = vmatpush.msra.mxu0 %v1143
      %1244 = vmatpush.msra.mxu0 %v1140
      %1245 = vmatmul.f32.gmra.mxu0 %v1167
      %v1246 = vpop.f32.mrf.mxu0
      %v1247 = vadd.f32 0.0, %v1246
      %1248 = vdwg.mxu0
      %1249 = vmatpush.msra.mxu0 0.0
      %1250 = vmatpush.msra.mxu0 0.0
      %1251 = vmatpush.msra.mxu0 0.0
      %1252 = vmatpush.msra.mxu0 0.0
      %1253 = vmatpush.msra.mxu0 0.0
      %1254 = vmatpush.msra.mxu0 0.0
      %1255 = vmatpush.msra.mxu0 0.0
      %1256 = vmatpush.msra.mxu0 0.0
      %1257 = vmatpush.msra.mxu0 0.0
      %1258 = vmatpush.msra.mxu0 0.0
      %1259 = vmatpush.msra.mxu0 0.0
      %1260 = vmatpush.msra.mxu0 0.0
      %1261 = vmatpush.msra.mxu0 0.0
      %1262 = vmatpush.msra.mxu0 %v1155
      %1263 = vmatpush.msra.mxu0 %v1152
      %1264 = vmatpush.msra.mxu0 %v1149
      %1265 = vmatmul.f32.gmra.mxu0 %v1167
      %v1266 = vpop.f32.mrf.mxu0
      %v1267 = vadd.f32 0.0, %v1266
      %1268 = vdwg.mxu0
      %1269 = vmatpush.msra.mxu0 0.0
      %1270 = vmatpush.msra.mxu0 0.0
      %1271 = vmatpush.msra.mxu0 0.0
      %1272 = vmatpush.msra.mxu0 0.0
      %1273 = vmatpush.msra.mxu0 0.0
      %1274 = vmatpush.msra.mxu0 0.0
      %1275 = vmatpush.msra.mxu0 0.0
      %1276 = vmatpush.msra.mxu0 0.0
      %1277 = vmatpush.msra.mxu0 0.0
      %1278 = vmatpush.msra.mxu0 0.0
      %1279 = vmatpush.msra.mxu0 0.0
      %1280 = vmatpush.msra.mxu0 0.0
      %1281 = vmatpush.msra.mxu0 0.0
      %1282 = vmatpush.msra.mxu0 %v1164
      %1283 = vmatpush.msra.mxu0 %v1161
      %1284 = vmatpush.msra.mxu0 %v1158
      %1285 = vmatmul.f32.gmra.mxu0 %v1167
      %v1286 = vpop.f32.mrf.mxu0
      %v1287 = vadd.f32 0.0, %v1286
      %1288 = vdwg.mxu0
      %1295 = vrot.lane.b32.xlu0 %v639, 8
      %v1296 = vpop.permute.xlu0 %1295
      %1297 = vrot.lane.b32.xlu0 %v659, 8
      %v1298 = vpop.permute.xlu0 %1297
      %1299 = vrot.lane.b32.xlu0 %v679, 8
      %v1300 = vpop.permute.xlu0 %1299
      %1301 = vrot.lane.b32.xlu0 %v699, 8
      %v1302 = vpop.permute.xlu0 %1301
      %1303 = vrot.lane.b32.xlu0 %v719, 8
      %v1304 = vpop.permute.xlu0 %1303
      %1305 = vrot.lane.b32.xlu0 %v739, 8
      %v1306 = vpop.permute.xlu0 %1305
      %1319 = vrot.lane.b32.xlu0 %v913, 16
      %v1320 = vpop.permute.xlu0 %1319
      %1321 = vrot.lane.b32.xlu0 %v933, 16
      %v1322 = vpop.permute.xlu0 %1321
      %1323 = vrot.lane.b32.xlu0 %v953, 16
      %v1324 = vpop.permute.xlu0 %1323
      %1325 = vrot.lane.b32.xlu0 %v973, 16
      %v1326 = vpop.permute.xlu0 %1325
      %1327 = vrot.lane.b32.xlu0 %v993, 16
      %v1328 = vpop.permute.xlu0 %1327
      %1329 = vrot.lane.b32.xlu0 %v1013, 16
      %v1330 = vpop.permute.xlu0 %1329
      %1343 = vrot.lane.b32.xlu0 %v1187, 24
      %v1344 = vpop.permute.xlu0 %1343
      %1345 = vrot.lane.b32.xlu0 %v1207, 24
      %v1346 = vpop.permute.xlu0 %1345
      %1347 = vrot.lane.b32.xlu0 %v1227, 24
      %v1348 = vpop.permute.xlu0 %1347
      %1349 = vrot.lane.b32.xlu0 %v1247, 24
      %v1350 = vpop.permute.xlu0 %1349
      %1351 = vrot.lane.b32.xlu0 %v1267, 24
      %v1352 = vpop.permute.xlu0 %1351
      %1353 = vrot.lane.b32.xlu0 %v1287, 24
      %v1354 = vpop.permute.xlu0 %1353
      %vm1361 = vcmask 64512
      %v1362 = vsel %vm1361, %v364, %v1296
      %v1363 = vsel %vm1361, %v384, %v1298
      %v1364 = vsel %vm1361, %v404, %v1300
      %v1365 = vsel %vm1361, %v424, %v1302
      %v1366 = vsel %vm1361, %v444, %v1304
      %v1367 = vsel %vm1361, %v464, %v1306
      %vm1368 = vcmask 130048
      %v1369 = vsel %vm1368, %v1362, %v1320
      %v1370 = vsel %vm1368, %v1363, %v1322
      %v1371 = vsel %vm1368, %v1364, %v1324
      %v1372 = vsel %vm1368, %v1365, %v1326
      %v1373 = vsel %vm1368, %v1366, %v1328
      %v1374 = vsel %vm1368, %v1367, %v1330
      %v1375 = vsel %vm214, %v1369, %v1344
      %v1376 = vsel %vm214, %v1370, %v1346
      %v1377 = vsel %vm214, %v1371, %v1348
      %v1378 = vsel %vm214, %v1372, %v1350
      %v1379 = vsel %vm214, %v1373, %v1352
      %v1380 = vsel %vm214, %v1374, %v1354
      %vm1381 = vcmask 261120
      %1382 = vst.msk [vmem:[%s105] sm:$0xff] %vm1381, %v1375
      %1383 = vst.msk [vmem:[%s105 + $0x8] sm:$0xff] %vm1381, %v1376
      %1384 = vst.msk [vmem:[%s105 + $0x10] sm:$0xff] %vm1381, %v1377
      %1385 = vst.msk [vmem:[%s105 + $0x18] sm:$0xff] %vm1381, %v1378
      %1386 = vst.msk [vmem:[%s105 + $0x20] sm:$0xff] %vm1381, %v1379
      %1387 = vst.msk [vmem:[%s105 + $0x28] sm:$0xff] %vm1381, %v1380
      %p1388 = scmp.lt.s32.totalorder %s21, 1
      %s1389 = scalar_select %p1388, %s21, 1
      %s1390 = smul.addr %s1389, 6
      %s1391 = smul.addr %s1390, 8
      %s1392 = scalar_lea.vmem %s2, %s1391
      // Predicated region
      $region25: #{_lambda_.1} parent=23 // pred_check
        %p1393 = pneg %p60
      $region26: #{_lambda_.1} parent=23 // pred_check_branch
        %1395 = sbr.rel (%p1393) target = $region28
      $region27: #{_lambda_.1} parent=23 // pred_region
        _
      $region28: #{_lambda_.1} parent=23 // pred_fallthru
        _
    $region24: #{_lambda_.1} parent=5 // pred_fallthru
      _
    %p1396 = scmp.le.s32.totalorder 2, %s16
    // Predicated region
    $region29: #{_lambda_.1} parent=5 // pred_check
      %p1397 = pneg %p1396
    $region30: #{_lambda_.1} parent=5 // pred_check_branch
      %1399 = sbr.rel (%p1397) target = $region32
    $region31: #{_lambda_.1} parent=5 // pred_region
      %s1400 = ssub.s32 %s16, 2
      // Predicated region
      $region33: #{_lambda_.1} parent=31 // pred_check
        %p1401 = pneg %p66
      $region34: #{_lambda_.1} parent=31 // pred_check_branch
        %1403 = sbr.rel (%p1401) target = $region36
      $region35: #{_lambda_.1} parent=31 // pred_region
        %p1404 = scmp.lt.s32.totalorder %s22, 1
        %s1405 = scalar_select %p1404, %s22, 1
        %s1406 = smul.addr %s1405, 6
        %s1407 = smul.addr %s1406, 8
        %s1408 = scalar_lea.vmem %s2, %s1407
      $region36: #{_lambda_.1} parent=31 // pred_fallthru
        _
    $region32: #{_lambda_.1} parent=5 // pred_fallthru
      _
  $region6: #{_lambda_.1} parent=0 // loop_footer
    %s20 = sadd.s32 1, %s16
  $region7: #{_lambda_.1} parent=0 // loop_footer_branch
    %15 = sbr.rel target = $region3
  $region8: #{_lambda_.1} parent=0 // loop_exit
    _

</llo_original>
